<compile_context>
chip_gen: v5e
topology: v5e:2x2
jax: 0.10.0
libtpu: 0.0.40
codegen_flags: <defaults>
</compile_context>

<pallas_src>
import functools
import math

import numpy as np
import jax
import jax.numpy as jnp
from jax.experimental import pallas as pl
from jax.experimental.pallas import tpu as pltpu


def _unpool_kernel(x_ref, idx_ref, smat_ref, o_ref, *, w_out, w_shift):
    """x_ref, idx_ref: (bs, rw); smat_ref: (4*rw, 4*rw) bf16; o_ref: (bs, 4*rw)."""
    x = x_ref[...]
    idx = idx_ref[...]

    # Decode the intra-2x2 sub-pixel slot from the flat (2H,2W) index:
    # dx = column parity, dy = row parity. Shift instead of divide when 2W is
    # a power of two.
    dx_sel = jnp.bitwise_and(idx, 1)
    row = jnp.right_shift(idx, w_shift) if w_shift is not None else idx // w_out
    dy_sel = jnp.bitwise_and(row, 1)
    q_code = dx_sel + 2 * dy_sel                       # 0..3 sub-pixel slot
    sels = [q_code == q for q in range(4)]             # computed once, reused

    # Exact bf16 decomposition of x: a single part if x is already bf16, else
    # a 3-way hi/mid/lo split (covers all 24 f32 mantissa bits) so the three
    # bf16 x {0,1} matmuls accumulated in f32 reproduce the f32 value exactly.
    # (A 2-way split would NOT be exact; the 3-way one is required.)
    if x.dtype == jnp.bfloat16:
        parts = (x,)
    else:
        xf = x.astype(jnp.float32)
        hi = xf.astype(jnp.bfloat16)
        r1 = xf - hi.astype(jnp.float32)
        mid = r1.astype(jnp.bfloat16)
        lo = (r1 - mid.astype(jnp.float32)).astype(jnp.bfloat16)
        parts = (hi, mid, lo)

    zero = jnp.zeros((), jnp.bfloat16)
    smat = smat_ref[...]
    acc = None
    for p in parts:
        # One fused K = 4*rw matmul scatters all four sub-pixel slots at once;
        # each output column has exactly one 1 in smat, so placement is exact.
        cat = jnp.concatenate([jnp.where(s, p, zero) for s in sels], axis=-1)
        contrib = jnp.dot(cat, smat, preferred_element_type=jnp.float32)
        acc = contrib if acc is None else acc + contrib
    o_ref[...] = acc.astype(o_ref.dtype)


def _two_tensorcores():
    """True on chips with 2 TensorCores (v7x); conservative False otherwise."""
    try:
        kind = jax.devices()[0].device_kind.lower()
    except Exception:
        return False
    return ("v7" in kind) or ("tpu7" in kind)


def max_unpool2d_2x2(x, indices):
    """x: (N,C,H,W) float; indices: (N,C,H,W) int, flat over the (2H,2W) plane."""
    N, C, H, W = x.shape
    P = N * C
    w_out = 2 * W
    total_rows = P * H

    # Pack R consecutive input rows per kernel row so rw = R*W is a multiple
    # of 128 where possible (unmasked lane loads/stores, full MXU contraction).
    # Row slabs may cross image-plane boundaries; the row-major
    # "input row -> two output rows" mapping still holds.
    R = 128 // math.gcd(W, 128)
    if R * W > 512:
        R = max(1, 128 // W)
    R = max(1, min(R, total_rows))
    rw = R * W
    ow = 4 * rw                       # 2R output rows of width 2W per slab

    # Pad flattened rows so slabs divide evenly (no-op for the test shapes).
    rows_pad = -(-total_rows // R) * R
    x2 = x.reshape(total_rows, W)
    idx2 = indices.reshape(total_rows, W).astype(jnp.int32)  # assumes 4*H*W < 2**31
    if rows_pad != total_rows:
        x2 = jnp.pad(x2, ((0, rows_pad - total_rows), (0, 0)))
        idx2 = jnp.pad(idx2, ((0, rows_pad - total_rows), (0, 0)))
    S = rows_pad // R
    x2 = x2.reshape(S, rw)
    idx2 = idx2.reshape(S, rw)

    # Stacked bf16 0/1 scatter matrix (4*rw, 4*rw): row block q (= dx + 2*dy)
    # maps input element (r, w) to output lane (2r+dy)*2W + 2w+dx.
    j = np.arange(rw)
    rr, wc = j // W, j % W
    smat_np = np.zeros((ow, ow), np.float32)
    for q in range(4):
        dx, dy = q & 1, q >> 1
        smat_np[q * rw + j, (2 * rr + dy) * w_out + 2 * wc + dx] = 1.0
    smat = jnp.asarray(smat_np, dtype=jnp.bfloat16)
    smat_bytes = ow * ow * 2

    # Rows per grid step: ~6 MiB of block data per step, reduced when smat is
    # large, rounded to the sublane granularity of the dtype.
    g = 16 if x.dtype == jnp.bfloat16 else 8
    isz = jnp.dtype(x.dtype).itemsize
    bytes_per_row = rw * isz + rw * 4 + ow * isz
    budget = max(1 << 20, (6 << 20) - 2 * smat_bytes)
    bs = max(g, (budget // bytes_per_row) // g * g)
    S_ceil = -(-S // g) * g
    bs = min(bs, S_ceil)
    # Only force >= 2 parallel steps where a second TensorCore exists (v7x).
    if _two_tensorcores() and bs >= S and S >= 2 * g:
        bs = max(g, (S // 2) // g * g)

    n_blocks = -(-S // bs)
    S_pad = n_blocks * bs
    if S_pad != S:
        x2 = jnp.pad(x2, ((0, S_pad - S), (0, 0)))
        idx2 = jnp.pad(idx2, ((0, S_pad - S), (0, 0)))

    vmem_limit = int(min(
        48 << 20,
        max(8 << 20,
            2 * bs * bytes_per_row      # double-buffered x/idx/out blocks
            + 2 * smat_bytes            # smat pipeline buffers (constant map)
            + 16 * bs * ow              # in-kernel temporaries (cats/acc)
            + (4 << 20)),               # headroom / compiler scratch
    ))

    w_shift = w_out.bit_length() - 1 if (w_out & (w_out - 1)) == 0 else None

    out = pl.pallas_call(
        functools.partial(_unpool_kernel, w_out=w_out, w_shift=w_shift),
        out_shape=jax.ShapeDtypeStruct((S_pad, ow), x.dtype),
        grid=(n_blocks,),
        in_specs=[
            pl.BlockSpec((bs, rw), lambda i: (i, 0)),
            pl.BlockSpec((bs, rw), lambda i: (i, 0)),
            pl.BlockSpec((ow, ow), lambda i: (0, 0)),
        ],
        out_specs=pl.BlockSpec((bs, ow), lambda i: (i, 0)),
        compiler_params=pltpu.CompilerParams(
            dimension_semantics=("parallel",),
            vmem_limit_bytes=vmem_limit,
        ),
    )(x2, idx2, smat)

    # (S_pad, ow) row-major == unpooled NCHW row-major; drop any pad rows.
    out = out.reshape(S_pad * 2 * R, w_out)[: 2 * total_rows]
    return out.reshape(N, C, 2 * H, 2 * W)


def _ref_unpool_np(x, indices):
    x = np.asarray(x)
    indices = np.asarray(indices)
    N, C, H, W = x.shape
    out = np.zeros((N, C, 2 * H * 2 * W), x.dtype)
    for n in range(N):
        for c in range(C):
            out[n, c, indices[n, c].reshape(-1)] = x[n, c].reshape(-1)
    return out.reshape(N, C, 2 * H, 2 * W)


if __name__ == "__main__":
    key = jax.random.PRNGKey(0)
    N, C, H, W = 2, 4, 16, 16
    kx, kdy, kdx = jax.random.split(key, 3)

    x = jax.random.normal(kx, (N, C, H, W), dtype=jnp.float32)

    # Valid max-unpool indices: each (h, w) points inside its own 2x2 output
    # block, exactly like max_pool2d(2, 2, return_indices=True).
    dy = jax.random.randint(kdy, (N, C, H, W), 0, 2)
    dx = jax.random.randint(kdx, (N, C, H, W), 0, 2)
    hh = jnp.arange(H)[None, None, :, None]
    ww = jnp.arange(W)[None, None, None, :]
    indices = ((2 * hh + dy) * (2 * W) + (2 * ww + dx)).astype(jnp.int32)

    y = max_unpool2d_2x2(x, indices)
    jax.block_until_ready(y)

    y_ref = _ref_unpool_np(x, indices)
    assert y.shape == (N, C, 2 * H, 2 * W)
    np.testing.assert_allclose(np.asarray(y), y_ref, rtol=1e-6, atol=1e-4)
    print("KERNEL_OK")
</pallas_src>

<mosaic_0001>
module attributes {stable_mosaic.version = 11 : i64} {
  func.func @_unpool_kernel(%arg0: i32, %arg1: memref<16x128xf32, #tpu.memory_space<vmem>>, %arg2: memref<16x128xi32, #tpu.memory_space<vmem>>, %arg3: memref<512x512xbf16, #tpu.memory_space<vmem>>, %arg4: memref<16x512xf32, #tpu.memory_space<vmem>>) attributes {dimension_semantics = [#tpu.dimension_semantics<parallel>], iteration_bounds = array<i64: 1>, scalar_prefetch = 0 : i64, scratch_operands = 0 : i64, tpu.core_type = #tpu.core_type<tc>, window_params = [{transform_indices = @transform_0, window_bounds = array<i64: 16, 128>}, {transform_indices = @transform_1, window_bounds = array<i64: 16, 128>}, {pipeline_mode = #tpu.pipeline_mode<synchronous>, transform_indices = @transform_2, window_bounds = array<i64: 512, 512>}, {transform_indices = @transform_3, window_bounds = array<i64: 16, 512>}]} {
    %c0 = arith.constant 0 : index
    %c0_0 = arith.constant 0 : index
    %0 = vector.load %arg1[%c0, %c0_0] : memref<16x128xf32, #tpu.memory_space<vmem>>, vector<16x128xf32>
    %c0_1 = arith.constant 0 : index
    %c0_2 = arith.constant 0 : index
    %1 = vector.load %arg2[%c0_1, %c0_2] : memref<16x128xi32, #tpu.memory_space<vmem>>, vector<16x128xi32>
    %c1_i32 = arith.constant 1 : i32
    %2 = vector.broadcast %c1_i32 : i32 to vector<16x128xi32>
    %3 = arith.andi %1, %2 : vector<16x128xi32>
    %c5_i32 = arith.constant 5 : i32
    %4 = vector.broadcast %c5_i32 : i32 to vector<16x128xi32>
    %5 = arith.shrsi %1, %4 : vector<16x128xi32>
    %c1_i32_3 = arith.constant 1 : i32
    %6 = vector.broadcast %c1_i32_3 : i32 to vector<16x128xi32>
    %7 = arith.andi %5, %6 : vector<16x128xi32>
    %c2_i32 = arith.constant 2 : i32
    %8 = vector.broadcast %c2_i32 : i32 to vector<16x128xi32>
    %9 = arith.muli %8, %7 : vector<16x128xi32>
    %10 = arith.addi %3, %9 : vector<16x128xi32>
    %c0_i32 = arith.constant 0 : i32
    %11 = vector.broadcast %c0_i32 : i32 to vector<16x128xi32>
    %12 = arith.cmpi eq, %10, %11 : vector<16x128xi32>
    %c1_i32_4 = arith.constant 1 : i32
    %13 = vector.broadcast %c1_i32_4 : i32 to vector<16x128xi32>
    %14 = arith.cmpi eq, %10, %13 : vector<16x128xi32>
    %c2_i32_5 = arith.constant 2 : i32
    %15 = vector.broadcast %c2_i32_5 : i32 to vector<16x128xi32>
    %16 = arith.cmpi eq, %10, %15 : vector<16x128xi32>
    %c3_i32 = arith.constant 3 : i32
    %17 = vector.broadcast %c3_i32 : i32 to vector<16x128xi32>
    %18 = arith.cmpi eq, %10, %17 : vector<16x128xi32>
    %19 = arith.truncf %0 : vector<16x128xf32> to vector<16x128xbf16>
    %20 = arith.extf %19 : vector<16x128xbf16> to vector<16x128xf32>
    %21 = arith.subf %0, %20 : vector<16x128xf32>
    %22 = arith.truncf %21 : vector<16x128xf32> to vector<16x128xbf16>
    %23 = arith.extf %22 : vector<16x128xbf16> to vector<16x128xf32>
    %24 = arith.subf %21, %23 : vector<16x128xf32>
    %25 = arith.truncf %24 : vector<16x128xf32> to vector<16x128xbf16>
    %c0_6 = arith.constant 0 : index
    %c0_7 = arith.constant 0 : index
    %26 = vector.load %arg3[%c0_6, %c0_7] : memref<512x512xbf16, #tpu.memory_space<vmem>>, vector<512x512xbf16>
    %cst = arith.constant 0.000000e+00 : bf16
    %27 = vector.broadcast %cst : bf16 to vector<16x128xbf16>
    %28 = arith.select %12, %19, %27 : vector<16x128xi1>, vector<16x128xbf16>
    %cst_8 = arith.constant 0.000000e+00 : bf16
    %29 = vector.broadcast %cst_8 : bf16 to vector<16x128xbf16>
    %30 = arith.select %14, %19, %29 : vector<16x128xi1>, vector<16x128xbf16>
    %cst_9 = arith.constant 0.000000e+00 : bf16
    %31 = vector.broadcast %cst_9 : bf16 to vector<16x128xbf16>
    %32 = arith.select %16, %19, %31 : vector<16x128xi1>, vector<16x128xbf16>
    %cst_10 = arith.constant 0.000000e+00 : bf16
    %33 = vector.broadcast %cst_10 : bf16 to vector<16x128xbf16>
    %34 = arith.select %18, %19, %33 : vector<16x128xi1>, vector<16x128xbf16>
    %35 = tpu.concatenate %28, %30, %32, %34 in 1 : vector<16x128xbf16>, vector<16x128xbf16>, vector<16x128xbf16>, vector<16x128xbf16> -> vector<16x512xbf16>
    %cst_11 = arith.constant dense<0.000000e+00> : vector<16x512xf32>
    %36 = tpu.matmul %35, %26, %cst_11 {dimension_numbers = #tpu.dot_dimension_numbers<[1], [0], [0], [1], [0, 0, 1, 1], [], []>} : vector<16x512xbf16>, vector<512x512xbf16>, vector<16x512xf32> -> vector<16x512xf32>
    %cst_12 = arith.constant 0.000000e+00 : bf16
    %37 = vector.broadcast %cst_12 : bf16 to vector<16x128xbf16>
    %38 = arith.select %12, %22, %37 : vector<16x128xi1>, vector<16x128xbf16>
    %cst_13 = arith.constant 0.000000e+00 : bf16
    %39 = vector.broadcast %cst_13 : bf16 to vector<16x128xbf16>
    %40 = arith.select %14, %22, %39 : vector<16x128xi1>, vector<16x128xbf16>
    %cst_14 = arith.constant 0.000000e+00 : bf16
    %41 = vector.broadcast %cst_14 : bf16 to vector<16x128xbf16>
    %42 = arith.select %16, %22, %41 : vector<16x128xi1>, vector<16x128xbf16>
    %cst_15 = arith.constant 0.000000e+00 : bf16
    %43 = vector.broadcast %cst_15 : bf16 to vector<16x128xbf16>
    %44 = arith.select %18, %22, %43 : vector<16x128xi1>, vector<16x128xbf16>
    %45 = tpu.concatenate %38, %40, %42, %44 in 1 : vector<16x128xbf16>, vector<16x128xbf16>, vector<16x128xbf16>, vector<16x128xbf16> -> vector<16x512xbf16>
    %cst_16 = arith.constant dense<0.000000e+00> : vector<16x512xf32>
    %46 = tpu.matmul %45, %26, %cst_16 {dimension_numbers = #tpu.dot_dimension_numbers<[1], [0], [0], [1], [0, 0, 1, 1], [], []>} : vector<16x512xbf16>, vector<512x512xbf16>, vector<16x512xf32> -> vector<16x512xf32>
    %47 = arith.addf %36, %46 : vector<16x512xf32>
    %cst_17 = arith.constant 0.000000e+00 : bf16
    %48 = vector.broadcast %cst_17 : bf16 to vector<16x128xbf16>
    %49 = arith.select %12, %25, %48 : vector<16x128xi1>, vector<16x128xbf16>
    %cst_18 = arith.constant 0.000000e+00 : bf16
    %50 = vector.broadcast %cst_18 : bf16 to vector<16x128xbf16>
    %51 = arith.select %14, %25, %50 : vector<16x128xi1>, vector<16x128xbf16>
    %cst_19 = arith.constant 0.000000e+00 : bf16
    %52 = vector.broadcast %cst_19 : bf16 to vector<16x128xbf16>
    %53 = arith.select %16, %25, %52 : vector<16x128xi1>, vector<16x128xbf16>
    %cst_20 = arith.constant 0.000000e+00 : bf16
    %54 = vector.broadcast %cst_20 : bf16 to vector<16x128xbf16>
    %55 = arith.select %18, %25, %54 : vector<16x128xi1>, vector<16x128xbf16>
    %56 = tpu.concatenate %49, %51, %53, %55 in 1 : vector<16x128xbf16>, vector<16x128xbf16>, vector<16x128xbf16>, vector<16x128xbf16> -> vector<16x512xbf16>
    %cst_21 = arith.constant dense<0.000000e+00> : vector<16x512xf32>
    %57 = tpu.matmul %56, %26, %cst_21 {dimension_numbers = #tpu.dot_dimension_numbers<[1], [0], [0], [1], [0, 0, 1, 1], [], []>} : vector<16x512xbf16>, vector<512x512xbf16>, vector<16x512xf32> -> vector<16x512xf32>
    %58 = arith.addf %47, %57 : vector<16x512xf32>
    %c0_22 = arith.constant 0 : index
    %c0_23 = arith.constant 0 : index
    %59 = vector.load %arg4[%c0_22, %c0_23] : memref<16x512xf32, #tpu.memory_space<vmem>>, vector<16x512xf32>
    tpu.vector_store %arg4[%c0_22, %c0_23], %58 {strides = array<i32>} : memref<16x512xf32, #tpu.memory_space<vmem>>, vector<16x512xf32>,
    return
  }
  func.func @transform_0(%arg0: i32) -> (i32, i32) {
    %c0_i32 = arith.constant 0 : i32
    %c0_i32_0 = arith.constant 0 : i32
    return %arg0, %c0_i32 : i32, i32
  }
  func.func @transform_1(%arg0: i32) -> (i32, i32) {
    %c0_i32 = arith.constant 0 : i32
    %c0_i32_0 = arith.constant 0 : i32
    return %arg0, %c0_i32 : i32, i32
  }
  func.func @transform_2(%arg0: i32) -> (i32, i32) {
    %c0_i32 = arith.constant 0 : i32
    %c0_i32_0 = arith.constant 0 : i32
    %c0_i32_1 = arith.constant 0 : i32
    return %c0_i32, %c0_i32_0 : i32, i32
  }
  func.func @transform_3(%arg0: i32) -> (i32, i32) {
    %c0_i32 = arith.constant 0 : i32
    %c0_i32_0 = arith.constant 0 : i32
    return %arg0, %c0_i32 : i32, i32
  }
}

</mosaic_0001>

<llo_original>
// kernel: tpu_custom_call.1
$region0: #{tpu_custom_call.1}
  #allocation0 [shape = 'u32[]', space=smem, size = 0x4, offset = 0x4, fixed_abs, tag = 'smem constant byte address 0x4 - core index']
  #allocation1 [shape = 'u32[72,128]{1,0:T(1,128)}', space=vmem, size = 0x9000, scoped, tag = 'internal scratch']
  %s0 = inlined_call_operand.hbm [shape: f32[16,128], index: 0, kind: input, shape index: {}]
  %s1 = inlined_call_operand.hbm [shape: s32[16,128], index: 1, kind: input, shape index: {}]
  %s2 = inlined_call_operand.hbm [shape: bf16[512,512], index: 2, kind: input, shape index: {}]
  %s3 = inlined_call_operand.hbm [shape: f32[16,512], index: 3, kind: output, shape index: {}]
  %s4 = sld [smem:[#allocation0]]
  $region34: #{tpu_custom_call.1} parent=0
    _
  %s6 = ssub.s32 1, %s4
  %s7 = scalar_select 0, %s6, %s4
  $region1: #{tpu_custom_call.1} parent=0
    #allocation2 [shape = 'u8[8192]{0}', space=vmem, size = 0x2000, scoped, tag = 'input window, operand 0, single buffered']
    #allocation3 [shape = 's32[1]{0}', space=sflag, size = 0x4, scoped, tag = 'scoped memory for tpu_custom_call.1']
    #allocation4 [shape = 's32[1]{0}', space=sflag, size = 0x4, scoped, tag = 'scoped memory for tpu_custom_call.1']
    #allocation5 [shape = 'u8[8192]{0}', space=vmem, size = 0x2000, scoped, tag = 'input window, operand 1, single buffered']
    #allocation6 [shape = 's32[1]{0}', space=sflag, size = 0x4, scoped, tag = 'scoped memory for tpu_custom_call.1']
    #allocation7 [shape = 'u8[524288]{0}', space=vmem, size = 0x80000, scoped, tag = 'input window, operand 2, single buffered']
    #allocation8 [shape = 'u8[32768]{0}', space=vmem, size = 0x8000, scoped, tag = 'output window, operand 0, single buffered']
    %8 = vsyncpa [#allocation3], 0
    %9 = vsyncpa [#allocation6], 0
    %10 = vsyncpa [#allocation4], 0
    // Predicated region
    $region2: #{tpu_custom_call.1} parent=1 // pred_check
      _
    $region3: #{tpu_custom_call.1} parent=1 // pred_check_branch
      %12 = sbr.rel (0) target = $region5
    $region4: #{tpu_custom_call.1} parent=1 // pred_region
      %14 = vsyncadd [#allocation3], 0
      %s15 = sshll.u32 %s0, 4
      %s16 = int_to_ptr.hbm [resolvable:$true] %s15
      %s17 = sshll.u32 [#allocation2], 4
      %s18 = int_to_ptr.vmem [resolvable:$true] %s17
      %23 = dma.hbm_to_vmem [thread:$0]  %s16, 256, %s18, [#allocation3], 128, 128, 8
    $region5: #{tpu_custom_call.1} parent=1 // pred_fallthru
      _
    // Predicated region
    $region6: #{tpu_custom_call.1} parent=1 // pred_check
      _
    $region7: #{tpu_custom_call.1} parent=1 // pred_check_branch
      %25 = sbr.rel (0) target = $region9
    $region8: #{tpu_custom_call.1} parent=1 // pred_region
      %27 = vsyncadd [#allocation6], 0
      %s28 = sshll.u32 %s1, 4
      %s29 = int_to_ptr.hbm [resolvable:$true] %s28
      %s30 = sshll.u32 [#allocation5], 4
      %s31 = int_to_ptr.vmem [resolvable:$true] %s30
      %36 = dma.hbm_to_vmem [thread:$0]  %s29, 256, %s31, [#allocation6], 128, 128, 8
    $region9: #{tpu_custom_call.1} parent=1 // pred_fallthru
      _
    // Predicated region
    $region10: #{tpu_custom_call.1} parent=1 // pred_check
      _
    $region11: #{tpu_custom_call.1} parent=1 // pred_check_branch
      %38 = sbr.rel (0) target = $region13
    $region12: #{tpu_custom_call.1} parent=1 // pred_region
      %40 = vsyncadd [#allocation6], 0
      %s41 = sshll.u32 %s2, 4
      %s42 = int_to_ptr.hbm [resolvable:$true] %s41
      %s43 = sshll.u32 [#allocation7], 4
      %s44 = int_to_ptr.vmem [resolvable:$true] %s43
      %49 = dma.hbm_to_vmem [thread:$0]  %s42, 16384, %s44, [#allocation6], 256, 256, 16
    $region13: #{tpu_custom_call.1} parent=1 // pred_fallthru
      _
    // Predicated region
    $region14: #{tpu_custom_call.1} parent=1 // pred_check
      _
    $region15: #{tpu_custom_call.1} parent=1 // pred_check_branch
      %51 = sbr.rel (0) target = $region17
    $region16: #{tpu_custom_call.1} parent=1 // pred_region
      %53 = dma.done [#allocation3], 256
    $region17: #{tpu_custom_call.1} parent=1 // pred_fallthru
      _
    // Predicated region
    $region18: #{tpu_custom_call.1} parent=1 // pred_check
      _
    $region19: #{tpu_custom_call.1} parent=1 // pred_check_branch
      %55 = sbr.rel (0) target = $region21
    $region20: #{tpu_custom_call.1} parent=1 // pred_region
      %57 = dma.done [#allocation6], 256
    $region21: #{tpu_custom_call.1} parent=1 // pred_fallthru
      _
    // Predicated region
    $region22: #{tpu_custom_call.1} parent=1 // pred_check
      _
    $region23: #{tpu_custom_call.1} parent=1 // pred_check_branch
      %59 = sbr.rel (0) target = $region25
    $region24: #{tpu_custom_call.1} parent=1 // pred_region
      %61 = dma.done [#allocation6], 16384
    $region25: #{tpu_custom_call.1} parent=1 // pred_fallthru
      _
    %v63 = vld [vmem:[#allocation2] sm:$0xff]
    %v64 = vld [vmem:[#allocation2 + $0x8] sm:$0xff]
    %v65 = vld [vmem:[#allocation5] sm:$0xff]
    %v66 = vld [vmem:[#allocation5 + $0x8] sm:$0xff]
    %v67 = vand.u32 %v65, 1
    %v68 = vand.u32 %v66, 1
    %v69 = vshra.s32 %v65, 5
    %v70 = vshra.s32 %v66, 5
    %v71 = vand.u32 %v69, 1
    %v72 = vand.u32 %v70, 1
    %v73 = vmul.u32 %v71, 2
    %v74 = vmul.u32 %v72, 2
    %v75 = vadd.s32 %v67, %v73
    %v76 = vadd.s32 %v68, %v74
    %vm77 = vcmp.eq.s32.totalorder %v75, 0
    %vm78 = vcmp.eq.s32.totalorder %v76, 0
    %vm79 = vcmp.eq.s32.totalorder %v75, 1
    %vm80 = vcmp.eq.s32.totalorder %v76, 1
    %vm81 = vcmp.eq.s32.totalorder %v75, 2
    %vm82 = vcmp.eq.s32.totalorder %v76, 2
    %vm83 = vcmp.eq.s32.totalorder %v75, 3
    %vm84 = vcmp.eq.s32.totalorder %v76, 3
    %v85 = vpack.c.bf16 %v63, %v63
    %v86 = vpack.c.bf16 %v64, %v64
    %v87 = vunpack.c.l.bf16 %v85
    %v88 = vunpack.c.l.bf16 %v86
    %v89 = vsub.f32 %v63, %v87
    %v90 = vsub.f32 %v64, %v88
    %v91 = vpack.c.bf16 %v89, %v89
    %v92 = vpack.c.bf16 %v90, %v90
    %v93 = vunpack.c.l.bf16 %v91
    %v94 = vunpack.c.l.bf16 %v92
    %v95 = vsub.f32 %v89, %v93
    %v96 = vsub.f32 %v90, %v94
    %v97 = vpack.c.bf16 %v95, %v95
    %v98 = vpack.c.bf16 %v96, %v96
    %v99 = vld [vmem:[#allocation7] sm:$0xff]
    %v100 = vld [vmem:[#allocation7 + $0x8] sm:$0xff]
    %v101 = vld [vmem:[#allocation7 + $0x10] sm:$0xff]
    %v102 = vld [vmem:[#allocation7 + $0x18] sm:$0xff]
    %v103 = vld [vmem:[#allocation7 + $0x20] sm:$0xff]
    %v104 = vld [vmem:[#allocation7 + $0x28] sm:$0xff]
    %v105 = vld [vmem:[#allocation7 + $0x30] sm:$0xff]
    %v106 = vld [vmem:[#allocation7 + $0x38] sm:$0xff]
    %v107 = vld [vmem:[#allocation7 + $0x40] sm:$0xff]
    %v108 = vld [vmem:[#allocation7 + $0x48] sm:$0xff]
    %v109 = vld [vmem:[#allocation7 + $0x50] sm:$0xff]
    %v110 = vld [vmem:[#allocation7 + $0x58] sm:$0xff]
    %v111 = vld [vmem:[#allocation7 + $0x60] sm:$0xff]
    %v112 = vld [vmem:[#allocation7 + $0x68] sm:$0xff]
    %v113 = vld [vmem:[#allocation7 + $0x70] sm:$0xff]
    %v114 = vld [vmem:[#allocation7 + $0x78] sm:$0xff]
    %v115 = vld [vmem:[#allocation7 + $0x80] sm:$0xff]
    %v116 = vld [vmem:[#allocation7 + $0x88] sm:$0xff]
    %v117 = vld [vmem:[#allocation7 + $0x90] sm:$0xff]
    %v118 = vld [vmem:[#allocation7 + $0x98] sm:$0xff]
    %v119 = vld [vmem:[#allocation7 + $0xa0] sm:$0xff]
    %v120 = vld [vmem:[#allocation7 + $0xa8] sm:$0xff]
    %v121 = vld [vmem:[#allocation7 + $0xb0] sm:$0xff]
    %v122 = vld [vmem:[#allocation7 + $0xb8] sm:$0xff]
    %v123 = vld [vmem:[#allocation7 + $0xc0] sm:$0xff]
    %v124 = vld [vmem:[#allocation7 + $0xc8] sm:$0xff]
    %v125 = vld [vmem:[#allocation7 + $0xd0] sm:$0xff]
    %v126 = vld [vmem:[#allocation7 + $0xd8] sm:$0xff]
    %v127 = vld [vmem:[#allocation7 + $0xe0] sm:$0xff]
    %v128 = vld [vmem:[#allocation7 + $0xe8] sm:$0xff]
    %v129 = vld [vmem:[#allocation7 + $0xf0] sm:$0xff]
    %v130 = vld [vmem:[#allocation7 + $0xf8] sm:$0xff]
    %v131 = vld [vmem:[#allocation7 + $0x100] sm:$0xff]
    %v132 = vld [vmem:[#allocation7 + $0x108] sm:$0xff]
    %v133 = vld [vmem:[#allocation7 + $0x110] sm:$0xff]
    %v134 = vld [vmem:[#allocation7 + $0x118] sm:$0xff]
    %v135 = vld [vmem:[#allocation7 + $0x120] sm:$0xff]
    %v136 = vld [vmem:[#allocation7 + $0x128] sm:$0xff]
    %v137 = vld [vmem:[#allocation7 + $0x130] sm:$0xff]
    %v138 = vld [vmem:[#allocation7 + $0x138] sm:$0xff]
    %v139 = vld [vmem:[#allocation7 + $0x140] sm:$0xff]
    %v140 = vld [vmem:[#allocation7 + $0x148] sm:$0xff]
    %v141 = vld [vmem:[#allocation7 + $0x150] sm:$0xff]
    %v142 = vld [vmem:[#allocation7 + $0x158] sm:$0xff]
    %v143 = vld [vmem:[#allocation7 + $0x160] sm:$0xff]
    %v144 = vld [vmem:[#allocation7 + $0x168] sm:$0xff]
    %v145 = vld [vmem:[#allocation7 + $0x170] sm:$0xff]
    %v146 = vld [vmem:[#allocation7 + $0x178] sm:$0xff]
    %v147 = vld [vmem:[#allocation7 + $0x180] sm:$0xff]
    %v148 = vld [vmem:[#allocation7 + $0x188] sm:$0xff]
    %v149 = vld [vmem:[#allocation7 + $0x190] sm:$0xff]
    %v150 = vld [vmem:[#allocation7 + $0x198] sm:$0xff]
    %v151 = vld [vmem:[#allocation7 + $0x1a0] sm:$0xff]
    %v152 = vld [vmem:[#allocation7 + $0x1a8] sm:$0xff]
    %v153 = vld [vmem:[#allocation7 + $0x1b0] sm:$0xff]
    %v154 = vld [vmem:[#allocation7 + $0x1b8] sm:$0xff]
    %v155 = vld [vmem:[#allocation7 + $0x1c0] sm:$0xff]
    %v156 = vld [vmem:[#allocation7 + $0x1c8] sm:$0xff]
    %v157 = vld [vmem:[#allocation7 + $0x1d0] sm:$0xff]
    %v158 = vld [vmem:[#allocation7 + $0x1d8] sm:$0xff]
    %v159 = vld [vmem:[#allocation7 + $0x1e0] sm:$0xff]
    %v160 = vld [vmem:[#allocation7 + $0x1e8] sm:$0xff]
    %v161 = vld [vmem:[#allocation7 + $0x1f0] sm:$0xff]
    %v162 = vld [vmem:[#allocation7 + $0x1f8] sm:$0xff]
    %v163 = vld [vmem:[#allocation7 + $0x200] sm:$0xff]
    %v164 = vld [vmem:[#allocation7 + $0x208] sm:$0xff]
    %v165 = vld [vmem:[#allocation7 + $0x210] sm:$0xff]
    %v166 = vld [vmem:[#allocation7 + $0x218] sm:$0xff]
    %v167 = vld [vmem:[#allocation7 + $0x220] sm:$0xff]
    %v168 = vld [vmem:[#allocation7 + $0x228] sm:$0xff]
    %v169 = vld [vmem:[#allocation7 + $0x230] sm:$0xff]
    %v170 = vld [vmem:[#allocation7 + $0x238] sm:$0xff]
    %v171 = vld [vmem:[#allocation7 + $0x240] sm:$0xff]
    %v172 = vld [vmem:[#allocation7 + $0x248] sm:$0xff]
    %v173 = vld [vmem:[#allocation7 + $0x250] sm:$0xff]
    %v174 = vld [vmem:[#allocation7 + $0x258] sm:$0xff]
    %v175 = vld [vmem:[#allocation7 + $0x260] sm:$0xff]
    %v176 = vld [vmem:[#allocation7 + $0x268] sm:$0xff]
    %v177 = vld [vmem:[#allocation7 + $0x270] sm:$0xff]
    %v178 = vld [vmem:[#allocation7 + $0x278] sm:$0xff]
    %v179 = vld [vmem:[#allocation7 + $0x280] sm:$0xff]
    %v180 = vld [vmem:[#allocation7 + $0x288] sm:$0xff]
    %v181 = vld [vmem:[#allocation7 + $0x290] sm:$0xff]
    %v182 = vld [vmem:[#allocation7 + $0x298] sm:$0xff]
    %v183 = vld [vmem:[#allocation7 + $0x2a0] sm:$0xff]
    %v184 = vld [vmem:[#allocation7 + $0x2a8] sm:$0xff]
    %v185 = vld [vmem:[#allocation7 + $0x2b0] sm:$0xff]
    %v186 = vld [vmem:[#allocation7 + $0x2b8] sm:$0xff]
    %v187 = vld [vmem:[#allocation7 + $0x2c0] sm:$0xff]
    %v188 = vld [vmem:[#allocation7 + $0x2c8] sm:$0xff]
    %v189 = vld [vmem:[#allocation7 + $0x2d0] sm:$0xff]
    %v190 = vld [vmem:[#allocation7 + $0x2d8] sm:$0xff]
    %v191 = vld [vmem:[#allocation7 + $0x2e0] sm:$0xff]
    %v192 = vld [vmem:[#allocation7 + $0x2e8] sm:$0xff]
    %v193 = vld [vmem:[#allocation7 + $0x2f0] sm:$0xff]
    %v194 = vld [vmem:[#allocation7 + $0x2f8] sm:$0xff]
    %v195 = vld [vmem:[#allocation7 + $0x300] sm:$0xff]
    %v196 = vld [vmem:[#allocation7 + $0x308] sm:$0xff]
    %v197 = vld [vmem:[#allocation7 + $0x310] sm:$0xff]
    %v198 = vld [vmem:[#allocation7 + $0x318] sm:$0xff]
    %v199 = vld [vmem:[#allocation7 + $0x320] sm:$0xff]
    %v200 = vld [vmem:[#allocation7 + $0x328] sm:$0xff]
    %v201 = vld [vmem:[#allocation7 + $0x330] sm:$0xff]
    %v202 = vld [vmem:[#allocation7 + $0x338] sm:$0xff]
    %v203 = vld [vmem:[#allocation7 + $0x340] sm:$0xff]
    %v204 = vld [vmem:[#allocation7 + $0x348] sm:$0xff]
    %v205 = vld [vmem:[#allocation7 + $0x350] sm:$0xff]
    %v206 = vld [vmem:[#allocation7 + $0x358] sm:$0xff]
    %v207 = vld [vmem:[#allocation7 + $0x360] sm:$0xff]
    %v208 = vld [vmem:[#allocation7 + $0x368] sm:$0xff]
    %v209 = vld [vmem:[#allocation7 + $0x370] sm:$0xff]
    %v210 = vld [vmem:[#allocation7 + $0x378] sm:$0xff]
    %v211 = vld [vmem:[#allocation7 + $0x380] sm:$0xff]
    %v212 = vld [vmem:[#allocation7 + $0x388] sm:$0xff]
    %v213 = vld [vmem:[#allocation7 + $0x390] sm:$0xff]
    %v214 = vld [vmem:[#allocation7 + $0x398] sm:$0xff]
    %v215 = vld [vmem:[#allocation7 + $0x3a0] sm:$0xff]
    %v216 = vld [vmem:[#allocation7 + $0x3a8] sm:$0xff]
    %v217 = vld [vmem:[#allocation7 + $0x3b0] sm:$0xff]
    %v218 = vld [vmem:[#allocation7 + $0x3b8] sm:$0xff]
    %v219 = vld [vmem:[#allocation7 + $0x3c0] sm:$0xff]
    %v220 = vld [vmem:[#allocation7 + $0x3c8] sm:$0xff]
    %v221 = vld [vmem:[#allocation7 + $0x3d0] sm:$0xff]
    %v222 = vld [vmem:[#allocation7 + $0x3d8] sm:$0xff]
    %v223 = vld [vmem:[#allocation7 + $0x3e0] sm:$0xff]
    %v224 = vld [vmem:[#allocation7 + $0x3e8] sm:$0xff]
    %v225 = vld [vmem:[#allocation7 + $0x3f0] sm:$0xff]
    %v226 = vld [vmem:[#allocation7 + $0x3f8] sm:$0xff]
    %vm227 = vmpackc.low %vm77, %vm77
    %vm228 = vmpackc.low %vm78, %vm78
    %v229 = vsel %vm227, %v85, 0
    %v230 = vsel %vm228, %v86, 0
    %vm231 = vmpackc.low %vm79, %vm79
    %vm232 = vmpackc.low %vm80, %vm80
    %v233 = vsel %vm231, %v85, 0
    %v234 = vsel %vm232, %v86, 0
    %vm235 = vmpackc.low %vm81, %vm81
    %vm236 = vmpackc.low %vm82, %vm82
    %v237 = vsel %vm235, %v85, 0
    %v238 = vsel %vm236, %v86, 0
    %vm239 = vmpackc.low %vm83, %vm83
    %vm240 = vmpackc.low %vm84, %vm84
    %v241 = vsel %vm239, %v85, 0
    %v242 = vsel %vm240, %v86, 0
    %v245 = vunpack.c.l.b16 %v229
    %v246 = vunpack.c.l.b16 %v230
    %v247 = vpack.c.b16 %v246, %v245
    %v251 = vunpack.c.l.b16 %v233
    %v252 = vunpack.c.l.b16 %v234
    %v253 = vpack.c.b16 %v252, %v251
    %v257 = vunpack.c.l.b16 %v237
    %v258 = vunpack.c.l.b16 %v238
    %v259 = vpack.c.b16 %v258, %v257
    %v263 = vunpack.c.l.b16 %v241
    %v264 = vunpack.c.l.b16 %v242
    %v265 = vpack.c.b16 %v264, %v263
    %v267 = vsel %vm227, %v91, 0
    %v268 = vsel %vm228, %v92, 0
    %v269 = vsel %vm231, %v91, 0
    %v270 = vsel %vm232, %v92, 0
    %v271 = vsel %vm235, %v91, 0
    %v272 = vsel %vm236, %v92, 0
    %v273 = vsel %vm239, %v91, 0
    %v274 = vsel %vm240, %v92, 0
    %v277 = vunpack.c.l.b16 %v267
    %v278 = vunpack.c.l.b16 %v268
    %v279 = vpack.c.b16 %v278, %v277
    %v283 = vunpack.c.l.b16 %v269
    %v284 = vunpack.c.l.b16 %v270
    %v285 = vpack.c.b16 %v284, %v283
    %v289 = vunpack.c.l.b16 %v271
    %v290 = vunpack.c.l.b16 %v272
    %v291 = vpack.c.b16 %v290, %v289
    %v295 = vunpack.c.l.b16 %v273
    %v296 = vunpack.c.l.b16 %v274
    %v297 = vpack.c.b16 %v296, %v295
    %v427 = vunpack.c.l.b16 %v99
    %v428 = vunpack.c.h.b16 %v99
    %v429 = vunpack.c.l.b16 %v100
    %v430 = vunpack.c.h.b16 %v100
    %v431 = vunpack.c.l.b16 %v101
    %v432 = vunpack.c.h.b16 %v101
    %v433 = vunpack.c.l.b16 %v102
    %v434 = vunpack.c.h.b16 %v102
    %v435 = vunpack.c.l.b16 %v103
    %v436 = vunpack.c.h.b16 %v103
    %v437 = vunpack.c.l.b16 %v104
    %v438 = vunpack.c.h.b16 %v104
    %v439 = vunpack.c.l.b16 %v105
    %v440 = vunpack.c.h.b16 %v105
    %v441 = vunpack.c.l.b16 %v106
    %v442 = vunpack.c.h.b16 %v106
    %v443 = vunpack.c.l.b16 %v107
    %v444 = vunpack.c.h.b16 %v107
    %v445 = vunpack.c.l.b16 %v108
    %v446 = vunpack.c.h.b16 %v108
    %v447 = vunpack.c.l.b16 %v109
    %v448 = vunpack.c.h.b16 %v109
    %v449 = vunpack.c.l.b16 %v110
    %v450 = vunpack.c.h.b16 %v110
    %v451 = vunpack.c.l.b16 %v111
    %v452 = vunpack.c.h.b16 %v111
    %v453 = vunpack.c.l.b16 %v112
    %v454 = vunpack.c.h.b16 %v112
    %v455 = vunpack.c.l.b16 %v113
    %v456 = vunpack.c.h.b16 %v113
    %v457 = vunpack.c.l.b16 %v114
    %v458 = vunpack.c.h.b16 %v114
    %v459 = vunpack.c.l.b16 %v115
    %v460 = vunpack.c.h.b16 %v115
    %v461 = vunpack.c.l.b16 %v116
    %v462 = vunpack.c.h.b16 %v116
    %v463 = vunpack.c.l.b16 %v117
    %v464 = vunpack.c.h.b16 %v117
    %v465 = vunpack.c.l.b16 %v118
    %v466 = vunpack.c.h.b16 %v118
    %v467 = vunpack.c.l.b16 %v119
    %v468 = vunpack.c.h.b16 %v119
    %v469 = vunpack.c.l.b16 %v120
    %v470 = vunpack.c.h.b16 %v120
    %v471 = vunpack.c.l.b16 %v121
    %v472 = vunpack.c.h.b16 %v121
    %v473 = vunpack.c.l.b16 %v122
    %v474 = vunpack.c.h.b16 %v122
    %v475 = vunpack.c.l.b16 %v123
    %v476 = vunpack.c.h.b16 %v123
    %v477 = vunpack.c.l.b16 %v124
    %v478 = vunpack.c.h.b16 %v124
    %v479 = vunpack.c.l.b16 %v125
    %v480 = vunpack.c.h.b16 %v125
    %v481 = vunpack.c.l.b16 %v126
    %v482 = vunpack.c.h.b16 %v126
    %v483 = vunpack.c.l.b16 %v127
    %v484 = vunpack.c.h.b16 %v127
    %v485 = vunpack.c.l.b16 %v128
    %v486 = vunpack.c.h.b16 %v128
    %v487 = vunpack.c.l.b16 %v129
    %v488 = vunpack.c.h.b16 %v129
    %v489 = vunpack.c.l.b16 %v130
    %v490 = vunpack.c.h.b16 %v130
    %v491 = vunpack.c.l.b16 %v131
    %v492 = vunpack.c.h.b16 %v131
    %v493 = vunpack.c.l.b16 %v132
    %v494 = vunpack.c.h.b16 %v132
    %v495 = vunpack.c.l.b16 %v133
    %v496 = vunpack.c.h.b16 %v133
    %v497 = vunpack.c.l.b16 %v134
    %v498 = vunpack.c.h.b16 %v134
    %v499 = vunpack.c.l.b16 %v135
    %v500 = vunpack.c.h.b16 %v135
    %v501 = vunpack.c.l.b16 %v136
    %v502 = vunpack.c.h.b16 %v136
    %v503 = vunpack.c.l.b16 %v137
    %v504 = vunpack.c.h.b16 %v137
    %v505 = vunpack.c.l.b16 %v138
    %v506 = vunpack.c.h.b16 %v138
    %v507 = vunpack.c.l.b16 %v139
    %v508 = vunpack.c.h.b16 %v139
    %v509 = vunpack.c.l.b16 %v140
    %v510 = vunpack.c.h.b16 %v140
    %v511 = vunpack.c.l.b16 %v141
    %v512 = vunpack.c.h.b16 %v141
    %v513 = vunpack.c.l.b16 %v142
    %v514 = vunpack.c.h.b16 %v142
    %v515 = vunpack.c.l.b16 %v143
    %v516 = vunpack.c.h.b16 %v143
    %v517 = vunpack.c.l.b16 %v144
    %v518 = vunpack.c.h.b16 %v144
    %v519 = vunpack.c.l.b16 %v145
    %v520 = vunpack.c.h.b16 %v145
    %v521 = vunpack.c.l.b16 %v146
    %v522 = vunpack.c.h.b16 %v146
    %v523 = vunpack.c.l.b16 %v147
    %v524 = vunpack.c.h.b16 %v147
    %v525 = vunpack.c.l.b16 %v148
    %v526 = vunpack.c.h.b16 %v148
    %v527 = vunpack.c.l.b16 %v149
    %v528 = vunpack.c.h.b16 %v149
    %v529 = vunpack.c.l.b16 %v150
    %v530 = vunpack.c.h.b16 %v150
    %v531 = vunpack.c.l.b16 %v151
    %v532 = vunpack.c.h.b16 %v151
    %v533 = vunpack.c.l.b16 %v152
    %v534 = vunpack.c.h.b16 %v152
    %v535 = vunpack.c.l.b16 %v153
    %v536 = vunpack.c.h.b16 %v153
    %v537 = vunpack.c.l.b16 %v154
    %v538 = vunpack.c.h.b16 %v154
    %v539 = vunpack.c.l.b16 %v155
    %v540 = vunpack.c.h.b16 %v155
    %v541 = vunpack.c.l.b16 %v156
    %v542 = vunpack.c.h.b16 %v156
    %v543 = vunpack.c.l.b16 %v157
    %v544 = vunpack.c.h.b16 %v157
    %v545 = vunpack.c.l.b16 %v158
    %v546 = vunpack.c.h.b16 %v158
    %v547 = vunpack.c.l.b16 %v159
    %v548 = vunpack.c.h.b16 %v159
    %v549 = vunpack.c.l.b16 %v160
    %v550 = vunpack.c.h.b16 %v160
    %v551 = vunpack.c.l.b16 %v161
    %v552 = vunpack.c.h.b16 %v161
    %v553 = vunpack.c.l.b16 %v162
    %v554 = vunpack.c.h.b16 %v162
    %v555 = vunpack.c.l.b16 %v163
    %v556 = vunpack.c.h.b16 %v163
    %v557 = vunpack.c.l.b16 %v164
    %v558 = vunpack.c.h.b16 %v164
    %v559 = vunpack.c.l.b16 %v165
    %v560 = vunpack.c.h.b16 %v165
    %v561 = vunpack.c.l.b16 %v166
    %v562 = vunpack.c.h.b16 %v166
    %v563 = vunpack.c.l.b16 %v167
    %v564 = vunpack.c.h.b16 %v167
    %v565 = vunpack.c.l.b16 %v168
    %v566 = vunpack.c.h.b16 %v168
    %v567 = vunpack.c.l.b16 %v169
    %v568 = vunpack.c.h.b16 %v169
    %v569 = vunpack.c.l.b16 %v170
    %v570 = vunpack.c.h.b16 %v170
    %v571 = vunpack.c.l.b16 %v171
    %v572 = vunpack.c.h.b16 %v171
    %v573 = vunpack.c.l.b16 %v172
    %v574 = vunpack.c.h.b16 %v172
    %v575 = vunpack.c.l.b16 %v173
    %v576 = vunpack.c.h.b16 %v173
    %v577 = vunpack.c.l.b16 %v174
    %v578 = vunpack.c.h.b16 %v174
    %v579 = vunpack.c.l.b16 %v175
    %v580 = vunpack.c.h.b16 %v175
    %v581 = vunpack.c.l.b16 %v176
    %v582 = vunpack.c.h.b16 %v176
    %v583 = vunpack.c.l.b16 %v177
    %v584 = vunpack.c.h.b16 %v177
    %v585 = vunpack.c.l.b16 %v178
    %v586 = vunpack.c.h.b16 %v178
    %v587 = vunpack.c.l.b16 %v179
    %v588 = vunpack.c.h.b16 %v179
    %v589 = vunpack.c.l.b16 %v180
    %v590 = vunpack.c.h.b16 %v180
    %v591 = vunpack.c.l.b16 %v181
    %v592 = vunpack.c.h.b16 %v181
    %v593 = vunpack.c.l.b16 %v182
    %v594 = vunpack.c.h.b16 %v182
    %v595 = vunpack.c.l.b16 %v183
    %v596 = vunpack.c.h.b16 %v183
    %v597 = vunpack.c.l.b16 %v184
    %v598 = vunpack.c.h.b16 %v184
    %v599 = vunpack.c.l.b16 %v185
    %v600 = vunpack.c.h.b16 %v185
    %v601 = vunpack.c.l.b16 %v186
    %v602 = vunpack.c.h.b16 %v186
    %v603 = vunpack.c.l.b16 %v187
    %v604 = vunpack.c.h.b16 %v187
    %v605 = vunpack.c.l.b16 %v188
    %v606 = vunpack.c.h.b16 %v188
    %v607 = vunpack.c.l.b16 %v189
    %v608 = vunpack.c.h.b16 %v189
    %v609 = vunpack.c.l.b16 %v190
    %v610 = vunpack.c.h.b16 %v190
    %v611 = vunpack.c.l.b16 %v191
    %v612 = vunpack.c.h.b16 %v191
    %v613 = vunpack.c.l.b16 %v192
    %v614 = vunpack.c.h.b16 %v192
    %v615 = vunpack.c.l.b16 %v193
    %v616 = vunpack.c.h.b16 %v193
    %v617 = vunpack.c.l.b16 %v194
    %v618 = vunpack.c.h.b16 %v194
    %v619 = vunpack.c.l.b16 %v195
    %v620 = vunpack.c.h.b16 %v195
    %v621 = vunpack.c.l.b16 %v196
    %v622 = vunpack.c.h.b16 %v196
    %v623 = vunpack.c.l.b16 %v197
    %v624 = vunpack.c.h.b16 %v197
    %v625 = vunpack.c.l.b16 %v198
    %v626 = vunpack.c.h.b16 %v198
    %v627 = vunpack.c.l.b16 %v199
    %v628 = vunpack.c.h.b16 %v199
    %v629 = vunpack.c.l.b16 %v200
    %v630 = vunpack.c.h.b16 %v200
    %v631 = vunpack.c.l.b16 %v201
    %v632 = vunpack.c.h.b16 %v201
    %v633 = vunpack.c.l.b16 %v202
    %v634 = vunpack.c.h.b16 %v202
    %v635 = vunpack.c.l.b16 %v203
    %v636 = vunpack.c.h.b16 %v203
    %v637 = vunpack.c.l.b16 %v204
    %v638 = vunpack.c.h.b16 %v204
    %v639 = vunpack.c.l.b16 %v205
    %v640 = vunpack.c.h.b16 %v205
    %v641 = vunpack.c.l.b16 %v206
    %v642 = vunpack.c.h.b16 %v206
    %v643 = vunpack.c.l.b16 %v207
    %v644 = vunpack.c.h.b16 %v207
    %v645 = vunpack.c.l.b16 %v208
    %v646 = vunpack.c.h.b16 %v208
    %v647 = vunpack.c.l.b16 %v209
    %v648 = vunpack.c.h.b16 %v209
    %v649 = vunpack.c.l.b16 %v210
    %v650 = vunpack.c.h.b16 %v210
    %v651 = vunpack.c.l.b16 %v211
    %v652 = vunpack.c.h.b16 %v211
    %v653 = vunpack.c.l.b16 %v212
    %v654 = vunpack.c.h.b16 %v212
    %v655 = vunpack.c.l.b16 %v213
    %v656 = vunpack.c.h.b16 %v213
    %v657 = vunpack.c.l.b16 %v214
    %v658 = vunpack.c.h.b16 %v214
    %v659 = vunpack.c.l.b16 %v215
    %v660 = vunpack.c.h.b16 %v215
    %v661 = vunpack.c.l.b16 %v216
    %v662 = vunpack.c.h.b16 %v216
    %v663 = vunpack.c.l.b16 %v217
    %v664 = vunpack.c.h.b16 %v217
    %v665 = vunpack.c.l.b16 %v218
    %v666 = vunpack.c.h.b16 %v218
    %v667 = vunpack.c.l.b16 %v219
    %v668 = vunpack.c.h.b16 %v219
    %v669 = vunpack.c.l.b16 %v220
    %v670 = vunpack.c.h.b16 %v220
    %v671 = vunpack.c.l.b16 %v221
    %v672 = vunpack.c.h.b16 %v221
    %v673 = vunpack.c.l.b16 %v222
    %v674 = vunpack.c.h.b16 %v222
    %v675 = vunpack.c.l.b16 %v223
    %v676 = vunpack.c.h.b16 %v223
    %v677 = vunpack.c.l.b16 %v224
    %v678 = vunpack.c.h.b16 %v224
    %v679 = vunpack.c.l.b16 %v225
    %v680 = vunpack.c.h.b16 %v225
    %v681 = vunpack.c.l.b16 %v226
    %v682 = vunpack.c.h.b16 %v226
    %v683 = vpack.c.b16 %v431, %v427
    %v684 = vpack.c.b16 %v432, %v428
    %v685 = vpack.c.b16 %v433, %v429
    %v686 = vpack.c.b16 %v434, %v430
    %v687 = vpack.c.b16 %v439, %v435
    %v688 = vpack.c.b16 %v440, %v436
    %v689 = vpack.c.b16 %v441, %v437
    %v690 = vpack.c.b16 %v442, %v438
    %v691 = vpack.c.b16 %v447, %v443
    %v692 = vpack.c.b16 %v448, %v444
    %v693 = vpack.c.b16 %v449, %v445
    %v694 = vpack.c.b16 %v450, %v446
    %v695 = vpack.c.b16 %v455, %v451
    %v696 = vpack.c.b16 %v456, %v452
    %v697 = vpack.c.b16 %v457, %v453
    %v698 = vpack.c.b16 %v458, %v454
    %v699 = vpack.c.b16 %v463, %v459
    %v700 = vpack.c.b16 %v464, %v460
    %v701 = vpack.c.b16 %v465, %v461
    %v702 = vpack.c.b16 %v466, %v462
    %v703 = vpack.c.b16 %v471, %v467
    %v704 = vpack.c.b16 %v472, %v468
    %v705 = vpack.c.b16 %v473, %v469
    %v706 = vpack.c.b16 %v474, %v470
    %v707 = vpack.c.b16 %v479, %v475
    %v708 = vpack.c.b16 %v480, %v476
    %v709 = vpack.c.b16 %v481, %v477
    %v710 = vpack.c.b16 %v482, %v478
    %v711 = vpack.c.b16 %v487, %v483
    %v712 = vpack.c.b16 %v488, %v484
    %v713 = vpack.c.b16 %v489, %v485
    %v714 = vpack.c.b16 %v490, %v486
    %v715 = vpack.c.b16 %v495, %v491
    %v716 = vpack.c.b16 %v496, %v492
    %v717 = vpack.c.b16 %v497, %v493
    %v718 = vpack.c.b16 %v498, %v494
    %v719 = vpack.c.b16 %v503, %v499
    %v720 = vpack.c.b16 %v504, %v500
    %v721 = vpack.c.b16 %v505, %v501
    %v722 = vpack.c.b16 %v506, %v502
    %v723 = vpack.c.b16 %v511, %v507
    %v724 = vpack.c.b16 %v512, %v508
    %v725 = vpack.c.b16 %v513, %v509
    %v726 = vpack.c.b16 %v514, %v510
    %v727 = vpack.c.b16 %v519, %v515
    %v728 = vpack.c.b16 %v520, %v516
    %v729 = vpack.c.b16 %v521, %v517
    %v730 = vpack.c.b16 %v522, %v518
    %v731 = vpack.c.b16 %v527, %v523
    %v732 = vpack.c.b16 %v528, %v524
    %v733 = vpack.c.b16 %v529, %v525
    %v734 = vpack.c.b16 %v530, %v526
    %v735 = vpack.c.b16 %v535, %v531
    %v736 = vpack.c.b16 %v536, %v532
    %v737 = vpack.c.b16 %v537, %v533
    %v738 = vpack.c.b16 %v538, %v534
    %v739 = vpack.c.b16 %v543, %v539
    %v740 = vpack.c.b16 %v544, %v540
    %v741 = vpack.c.b16 %v545, %v541
    %v742 = vpack.c.b16 %v546, %v542
    %v743 = vpack.c.b16 %v551, %v547
    %v744 = vpack.c.b16 %v552, %v548
    %v745 = vpack.c.b16 %v553, %v549
    %v746 = vpack.c.b16 %v554, %v550
    %v747 = vpack.c.b16 %v559, %v555
    %v748 = vpack.c.b16 %v560, %v556
    %v749 = vpack.c.b16 %v561, %v557
    %v750 = vpack.c.b16 %v562, %v558
    %v751 = vpack.c.b16 %v567, %v563
    %v752 = vpack.c.b16 %v568, %v564
    %v753 = vpack.c.b16 %v569, %v565
    %v754 = vpack.c.b16 %v570, %v566
    %v755 = vpack.c.b16 %v575, %v571
    %v756 = vpack.c.b16 %v576, %v572
    %v757 = vpack.c.b16 %v577, %v573
    %v758 = vpack.c.b16 %v578, %v574
    %v759 = vpack.c.b16 %v583, %v579
    %v760 = vpack.c.b16 %v584, %v580
    %v761 = vpack.c.b16 %v585, %v581
    %v762 = vpack.c.b16 %v586, %v582
    %v763 = vpack.c.b16 %v591, %v587
    %v764 = vpack.c.b16 %v592, %v588
    %v765 = vpack.c.b16 %v593, %v589
    %v766 = vpack.c.b16 %v594, %v590
    %v767 = vpack.c.b16 %v599, %v595
    %v768 = vpack.c.b16 %v600, %v596
    %v769 = vpack.c.b16 %v601, %v597
    %v770 = vpack.c.b16 %v602, %v598
    %v771 = vpack.c.b16 %v607, %v603
    %v772 = vpack.c.b16 %v608, %v604
    %v773 = vpack.c.b16 %v609, %v605
    %v774 = vpack.c.b16 %v610, %v606
    %v775 = vpack.c.b16 %v615, %v611
    %v776 = vpack.c.b16 %v616, %v612
    %v777 = vpack.c.b16 %v617, %v613
    %v778 = vpack.c.b16 %v618, %v614
    %v779 = vpack.c.b16 %v623, %v619
    %v780 = vpack.c.b16 %v624, %v620
    %v781 = vpack.c.b16 %v625, %v621
    %v782 = vpack.c.b16 %v626, %v622
    %v783 = vpack.c.b16 %v631, %v627
    %v784 = vpack.c.b16 %v632, %v628
    %v785 = vpack.c.b16 %v633, %v629
    %v786 = vpack.c.b16 %v634, %v630
    %v787 = vpack.c.b16 %v639, %v635
    %v788 = vpack.c.b16 %v640, %v636
    %v789 = vpack.c.b16 %v641, %v637
    %v790 = vpack.c.b16 %v642, %v638
    %v791 = vpack.c.b16 %v647, %v643
    %v792 = vpack.c.b16 %v648, %v644
    %v793 = vpack.c.b16 %v649, %v645
    %v794 = vpack.c.b16 %v650, %v646
    %v795 = vpack.c.b16 %v655, %v651
    %v796 = vpack.c.b16 %v656, %v652
    %v797 = vpack.c.b16 %v657, %v653
    %v798 = vpack.c.b16 %v658, %v654
    %v799 = vpack.c.b16 %v663, %v659
    %v800 = vpack.c.b16 %v664, %v660
    %v801 = vpack.c.b16 %v665, %v661
    %v802 = vpack.c.b16 %v666, %v662
    %v803 = vpack.c.b16 %v671, %v667
    %v804 = vpack.c.b16 %v672, %v668
    %v805 = vpack.c.b16 %v673, %v669
    %v806 = vpack.c.b16 %v674, %v670
    %v807 = vpack.c.b16 %v679, %v675
    %v808 = vpack.c.b16 %v680, %v676
    %v809 = vpack.c.b16 %v681, %v677
    %v810 = vpack.c.b16 %v682, %v678
    %939 = vmatpush.bf16.msra.mxu0 %v711
    %940 = vmatpush.bf16.msra.mxu0 %v707
    %941 = vmatpush.bf16.msra.mxu0 %v703
    %942 = vmatpush.bf16.msra.mxu0 %v699
    %943 = vmatpush.bf16.msra.mxu0 %v695
    %944 = vmatpush.bf16.msra.mxu0 %v691
    %945 = vmatpush.bf16.msra.mxu0 %v687
    %946 = vmatpush.bf16.msra.mxu0 %v683
    %947 = vmatmul.bf16.gmra.mxu0 %v279
    %v948 = vpop.f32.mrf.mxu0
    %v949 = vadd.f32 0.0, %v948
    %v950 = vpop.f32.mrf.mxu0
    %v951 = vadd.f32 0.0, %v950
    %952 = vdwg.mxu0
    %953 = vmatpush.bf16.msra.mxu0 %v743
    %954 = vmatpush.bf16.msra.mxu0 %v739
    %955 = vmatpush.bf16.msra.mxu0 %v735
    %956 = vmatpush.bf16.msra.mxu0 %v731
    %957 = vmatpush.bf16.msra.mxu0 %v727
    %958 = vmatpush.bf16.msra.mxu0 %v723
    %959 = vmatpush.bf16.msra.mxu0 %v719
    %960 = vmatpush.bf16.msra.mxu0 %v715
    %961 = vmatmul.bf16.gmra.mxu0 %v285
    %v962 = vpop.f32.mrf.mxu0
    %v963 = vadd.f32 %v949, %v962
    %v964 = vpop.f32.mrf.mxu0
    %v965 = vadd.f32 %v951, %v964
    %966 = vdwg.mxu0
    %967 = vmatpush.bf16.msra.mxu0 %v775
    %968 = vmatpush.bf16.msra.mxu0 %v771
    %969 = vmatpush.bf16.msra.mxu0 %v767
    %970 = vmatpush.bf16.msra.mxu0 %v763
    %971 = vmatpush.bf16.msra.mxu0 %v759
    %972 = vmatpush.bf16.msra.mxu0 %v755
    %973 = vmatpush.bf16.msra.mxu0 %v751
    %974 = vmatpush.bf16.msra.mxu0 %v747
    %975 = vmatmul.bf16.gmra.mxu0 %v291
    %v976 = vpop.f32.mrf.mxu0
    %v977 = vadd.f32 %v963, %v976
    %v978 = vpop.f32.mrf.mxu0
    %v979 = vadd.f32 %v965, %v978
    %980 = vdwg.mxu0
    %981 = vmatpush.bf16.msra.mxu0 %v807
    %982 = vmatpush.bf16.msra.mxu0 %v803
    %983 = vmatpush.bf16.msra.mxu0 %v799
    %984 = vmatpush.bf16.msra.mxu0 %v795
    %985 = vmatpush.bf16.msra.mxu0 %v791
    %986 = vmatpush.bf16.msra.mxu0 %v787
    %987 = vmatpush.bf16.msra.mxu0 %v783
    %988 = vmatpush.bf16.msra.mxu0 %v779
    %989 = vmatmul.bf16.gmra.mxu0 %v297
    %v990 = vpop.f32.mrf.mxu0
    %v991 = vadd.f32 %v977, %v990
    %v992 = vpop.f32.mrf.mxu0
    %v993 = vadd.f32 %v979, %v992
    %994 = vdwg.mxu0
    %995 = vmatpush.bf16.msra.mxu0 %v712
    %996 = vmatpush.bf16.msra.mxu0 %v708
    %997 = vmatpush.bf16.msra.mxu0 %v704
    %998 = vmatpush.bf16.msra.mxu0 %v700
    %999 = vmatpush.bf16.msra.mxu0 %v696
    %1000 = vmatpush.bf16.msra.mxu0 %v692
    %1001 = vmatpush.bf16.msra.mxu0 %v688
    %1002 = vmatpush.bf16.msra.mxu0 %v684
    %1003 = vmatmul.bf16.gmra.mxu0 %v279
    %v1004 = vpop.f32.mrf.mxu0
    %v1005 = vadd.f32 0.0, %v1004
    %v1006 = vpop.f32.mrf.mxu0
    %v1007 = vadd.f32 0.0, %v1006
    %1008 = vdwg.mxu0
    %1009 = vmatpush.bf16.msra.mxu0 %v744
    %1010 = vmatpush.bf16.msra.mxu0 %v740
    %1011 = vmatpush.bf16.msra.mxu0 %v736
    %1012 = vmatpush.bf16.msra.mxu0 %v732
    %1013 = vmatpush.bf16.msra.mxu0 %v728
    %1014 = vmatpush.bf16.msra.mxu0 %v724
    %1015 = vmatpush.bf16.msra.mxu0 %v720
    %1016 = vmatpush.bf16.msra.mxu0 %v716
    %1017 = vmatmul.bf16.gmra.mxu0 %v285
    %v1018 = vpop.f32.mrf.mxu0
    %v1019 = vadd.f32 %v1005, %v1018
    %v1020 = vpop.f32.mrf.mxu0
    %v1021 = vadd.f32 %v1007, %v1020
    %1022 = vdwg.mxu0
    %1023 = vmatpush.bf16.msra.mxu0 %v776
    %1024 = vmatpush.bf16.msra.mxu0 %v772
    %1025 = vmatpush.bf16.msra.mxu0 %v768
    %1026 = vmatpush.bf16.msra.mxu0 %v764
    %1027 = vmatpush.bf16.msra.mxu0 %v760
    %1028 = vmatpush.bf16.msra.mxu0 %v756
    %1029 = vmatpush.bf16.msra.mxu0 %v752
    %1030 = vmatpush.bf16.msra.mxu0 %v748
    %1031 = vmatmul.bf16.gmra.mxu0 %v291
    %v1032 = vpop.f32.mrf.mxu0
    %v1033 = vadd.f32 %v1019, %v1032
    %v1034 = vpop.f32.mrf.mxu0
    %v1035 = vadd.f32 %v1021, %v1034
    %1036 = vdwg.mxu0
    %1037 = vmatpush.bf16.msra.mxu0 %v808
    %1038 = vmatpush.bf16.msra.mxu0 %v804
    %1039 = vmatpush.bf16.msra.mxu0 %v800
    %1040 = vmatpush.bf16.msra.mxu0 %v796
    %1041 = vmatpush.bf16.msra.mxu0 %v792
    %1042 = vmatpush.bf16.msra.mxu0 %v788
    %1043 = vmatpush.bf16.msra.mxu0 %v784
    %1044 = vmatpush.bf16.msra.mxu0 %v780
    %1045 = vmatmul.bf16.gmra.mxu0 %v297
    %v1046 = vpop.f32.mrf.mxu0
    %v1047 = vadd.f32 %v1033, %v1046
    %v1048 = vpop.f32.mrf.mxu0
    %v1049 = vadd.f32 %v1035, %v1048
    %1050 = vdwg.mxu0
    %1051 = vmatpush.bf16.msra.mxu0 %v713
    %1052 = vmatpush.bf16.msra.mxu0 %v709
    %1053 = vmatpush.bf16.msra.mxu0 %v705
    %1054 = vmatpush.bf16.msra.mxu0 %v701
    %1055 = vmatpush.bf16.msra.mxu0 %v697
    %1056 = vmatpush.bf16.msra.mxu0 %v693
    %1057 = vmatpush.bf16.msra.mxu0 %v689
    %1058 = vmatpush.bf16.msra.mxu0 %v685
    %1059 = vmatmul.bf16.gmra.mxu0 %v279
    %v1060 = vpop.f32.mrf.mxu0
    %v1061 = vadd.f32 0.0, %v1060
    %v1062 = vpop.f32.mrf.mxu0
    %v1063 = vadd.f32 0.0, %v1062
    %1064 = vdwg.mxu0
    %1065 = vmatpush.bf16.msra.mxu0 %v745
    %1066 = vmatpush.bf16.msra.mxu0 %v741
    %1067 = vmatpush.bf16.msra.mxu0 %v737
    %1068 = vmatpush.bf16.msra.mxu0 %v733
    %1069 = vmatpush.bf16.msra.mxu0 %v729
    %1070 = vmatpush.bf16.msra.mxu0 %v725
    %1071 = vmatpush.bf16.msra.mxu0 %v721
    %1072 = vmatpush.bf16.msra.mxu0 %v717
    %1073 = vmatmul.bf16.gmra.mxu0 %v285
    %v1074 = vpop.f32.mrf.mxu0
    %v1075 = vadd.f32 %v1061, %v1074
    %v1076 = vpop.f32.mrf.mxu0
    %v1077 = vadd.f32 %v1063, %v1076
    %1078 = vdwg.mxu0
    %1079 = vmatpush.bf16.msra.mxu0 %v777
    %1080 = vmatpush.bf16.msra.mxu0 %v773
    %1081 = vmatpush.bf16.msra.mxu0 %v769
    %1082 = vmatpush.bf16.msra.mxu0 %v765
    %1083 = vmatpush.bf16.msra.mxu0 %v761
    %1084 = vmatpush.bf16.msra.mxu0 %v757
    %1085 = vmatpush.bf16.msra.mxu0 %v753
    %1086 = vmatpush.bf16.msra.mxu0 %v749
    %1087 = vmatmul.bf16.gmra.mxu0 %v291
    %v1088 = vpop.f32.mrf.mxu0
    %v1089 = vadd.f32 %v1075, %v1088
    %v1090 = vpop.f32.mrf.mxu0
    %v1091 = vadd.f32 %v1077, %v1090
    %1092 = vdwg.mxu0
    %1093 = vmatpush.bf16.msra.mxu0 %v809
    %1094 = vmatpush.bf16.msra.mxu0 %v805
    %1095 = vmatpush.bf16.msra.mxu0 %v801
    %1096 = vmatpush.bf16.msra.mxu0 %v797
    %1097 = vmatpush.bf16.msra.mxu0 %v793
    %1098 = vmatpush.bf16.msra.mxu0 %v789
    %1099 = vmatpush.bf16.msra.mxu0 %v785
    %1100 = vmatpush.bf16.msra.mxu0 %v781
    %1101 = vmatmul.bf16.gmra.mxu0 %v297
    %v1102 = vpop.f32.mrf.mxu0
    %v1103 = vadd.f32 %v1089, %v1102
    %v1104 = vpop.f32.mrf.mxu0
    %v1105 = vadd.f32 %v1091, %v1104
    %1106 = vdwg.mxu0
    %1107 = vmatpush.bf16.msra.mxu0 %v714
    %1108 = vmatpush.bf16.msra.mxu0 %v710
    %1109 = vmatpush.bf16.msra.mxu0 %v706
    %1110 = vmatpush.bf16.msra.mxu0 %v702
    %1111 = vmatpush.bf16.msra.mxu0 %v698
    %1112 = vmatpush.bf16.msra.mxu0 %v694
    %1113 = vmatpush.bf16.msra.mxu0 %v690
    %1114 = vmatpush.bf16.msra.mxu0 %v686
    %1115 = vmatmul.bf16.gmra.mxu0 %v279
    %v1116 = vpop.f32.mrf.mxu0
    %v1117 = vadd.f32 0.0, %v1116
    %v1118 = vpop.f32.mrf.mxu0
    %v1119 = vadd.f32 0.0, %v1118
    %1120 = vdwg.mxu0
    %1121 = vmatpush.bf16.msra.mxu0 %v746
    %1122 = vmatpush.bf16.msra.mxu0 %v742
    %1123 = vmatpush.bf16.msra.mxu0 %v738
    %1124 = vmatpush.bf16.msra.mxu0 %v734
    %1125 = vmatpush.bf16.msra.mxu0 %v730
    %1126 = vmatpush.bf16.msra.mxu0 %v726
    %1127 = vmatpush.bf16.msra.mxu0 %v722
    %1128 = vmatpush.bf16.msra.mxu0 %v718
    %1129 = vmatmul.bf16.gmra.mxu0 %v285
    %v1130 = vpop.f32.mrf.mxu0
    %v1131 = vadd.f32 %v1117, %v1130
    %v1132 = vpop.f32.mrf.mxu0
    %v1133 = vadd.f32 %v1119, %v1132
    %1134 = vdwg.mxu0
    %1135 = vmatpush.bf16.msra.mxu0 %v778
    %1136 = vmatpush.bf16.msra.mxu0 %v774
    %1137 = vmatpush.bf16.msra.mxu0 %v770
    %1138 = vmatpush.bf16.msra.mxu0 %v766
    %1139 = vmatpush.bf16.msra.mxu0 %v762
    %1140 = vmatpush.bf16.msra.mxu0 %v758
    %1141 = vmatpush.bf16.msra.mxu0 %v754
    %1142 = vmatpush.bf16.msra.mxu0 %v750
    %1143 = vmatmul.bf16.gmra.mxu0 %v291
    %v1144 = vpop.f32.mrf.mxu0
    %v1145 = vadd.f32 %v1131, %v1144
    %v1146 = vpop.f32.mrf.mxu0
    %v1147 = vadd.f32 %v1133, %v1146
    %1148 = vdwg.mxu0
    %1149 = vmatpush.bf16.msra.mxu0 %v810
    %1150 = vmatpush.bf16.msra.mxu0 %v806
    %1151 = vmatpush.bf16.msra.mxu0 %v802
    %1152 = vmatpush.bf16.msra.mxu0 %v798
    %1153 = vmatpush.bf16.msra.mxu0 %v794
    %1154 = vmatpush.bf16.msra.mxu0 %v790
    %1155 = vmatpush.bf16.msra.mxu0 %v786
    %1156 = vmatpush.bf16.msra.mxu0 %v782
    %1157 = vmatmul.bf16.gmra.mxu0 %v297
    %v1158 = vpop.f32.mrf.mxu0
    %v1159 = vadd.f32 %v1145, %v1158
    %v1160 = vpop.f32.mrf.mxu0
    %v1161 = vadd.f32 %v1147, %v1160
    %1162 = vdwg.mxu0
    %1163 = vmatpush.bf16.msra.mxu0 %v711
    %1164 = vmatpush.bf16.msra.mxu0 %v707
    %1165 = vmatpush.bf16.msra.mxu0 %v703
    %1166 = vmatpush.bf16.msra.mxu0 %v699
    %1167 = vmatpush.bf16.msra.mxu0 %v695
    %1168 = vmatpush.bf16.msra.mxu0 %v691
    %1169 = vmatpush.bf16.msra.mxu0 %v687
    %1170 = vmatpush.bf16.msra.mxu0 %v683
    %1171 = vmatmul.bf16.gmra.mxu0 %v247
    %v1172 = vpop.f32.mrf.mxu0
    %v1173 = vadd.f32 %v991, %v1172
    %v1174 = vpop.f32.mrf.mxu0
    %v1175 = vadd.f32 %v993, %v1174
    %1176 = vdwg.mxu0
    %1177 = vmatpush.bf16.msra.mxu0 %v743
    %1178 = vmatpush.bf16.msra.mxu0 %v739
    %1179 = vmatpush.bf16.msra.mxu0 %v735
    %1180 = vmatpush.bf16.msra.mxu0 %v731
    %1181 = vmatpush.bf16.msra.mxu0 %v727
    %1182 = vmatpush.bf16.msra.mxu0 %v723
    %1183 = vmatpush.bf16.msra.mxu0 %v719
    %1184 = vmatpush.bf16.msra.mxu0 %v715
    %1185 = vmatmul.bf16.gmra.mxu0 %v253
    %v1186 = vpop.f32.mrf.mxu0
    %v1187 = vadd.f32 %v1173, %v1186
    %v1188 = vpop.f32.mrf.mxu0
    %v1189 = vadd.f32 %v1175, %v1188
    %1190 = vdwg.mxu0
    %1191 = vmatpush.bf16.msra.mxu0 %v775
    %1192 = vmatpush.bf16.msra.mxu0 %v771
    %1193 = vmatpush.bf16.msra.mxu0 %v767
    %1194 = vmatpush.bf16.msra.mxu0 %v763
    %1195 = vmatpush.bf16.msra.mxu0 %v759
    %1196 = vmatpush.bf16.msra.mxu0 %v755
    %1197 = vmatpush.bf16.msra.mxu0 %v751
    %1198 = vmatpush.bf16.msra.mxu0 %v747
    %1199 = vmatmul.bf16.gmra.mxu0 %v259
    %v1200 = vpop.f32.mrf.mxu0
    %v1201 = vadd.f32 %v1187, %v1200
    %v1202 = vpop.f32.mrf.mxu0
    %v1203 = vadd.f32 %v1189, %v1202
    %1204 = vdwg.mxu0
    %1205 = vmatpush.bf16.msra.mxu0 %v807
    %1206 = vmatpush.bf16.msra.mxu0 %v803
    %1207 = vmatpush.bf16.msra.mxu0 %v799
    %1208 = vmatpush.bf16.msra.mxu0 %v795
    %1209 = vmatpush.bf16.msra.mxu0 %v791
    %1210 = vmatpush.bf16.msra.mxu0 %v787
    %1211 = vmatpush.bf16.msra.mxu0 %v783
    %1212 = vmatpush.bf16.msra.mxu0 %v779
    %1213 = vmatmul.bf16.gmra.mxu0 %v265
    %v1214 = vpop.f32.mrf.mxu0
    %v1215 = vadd.f32 %v1201, %v1214
    %v1216 = vpop.f32.mrf.mxu0
    %v1217 = vadd.f32 %v1203, %v1216
    %1218 = vdwg.mxu0
    %1219 = vmatpush.bf16.msra.mxu0 %v712
    %1220 = vmatpush.bf16.msra.mxu0 %v708
    %1221 = vmatpush.bf16.msra.mxu0 %v704
    %1222 = vmatpush.bf16.msra.mxu0 %v700
    %1223 = vmatpush.bf16.msra.mxu0 %v696
    %1224 = vmatpush.bf16.msra.mxu0 %v692
    %1225 = vmatpush.bf16.msra.mxu0 %v688
    %1226 = vmatpush.bf16.msra.mxu0 %v684
    %1227 = vmatmul.bf16.gmra.mxu0 %v247
    %v1228 = vpop.f32.mrf.mxu0
    %v1229 = vadd.f32 %v1047, %v1228
    %v1230 = vpop.f32.mrf.mxu0
    %v1231 = vadd.f32 %v1049, %v1230
    %1232 = vdwg.mxu0
    %1233 = vmatpush.bf16.msra.mxu0 %v744
    %1234 = vmatpush.bf16.msra.mxu0 %v740
    %1235 = vmatpush.bf16.msra.mxu0 %v736
    %1236 = vmatpush.bf16.msra.mxu0 %v732
    %1237 = vmatpush.bf16.msra.mxu0 %v728
    %1238 = vmatpush.bf16.msra.mxu0 %v724
    %1239 = vmatpush.bf16.msra.mxu0 %v720
    %1240 = vmatpush.bf16.msra.mxu0 %v716
    %1241 = vmatmul.bf16.gmra.mxu0 %v253
    %v1242 = vpop.f32.mrf.mxu0
    %v1243 = vadd.f32 %v1229, %v1242
    %v1244 = vpop.f32.mrf.mxu0
    %v1245 = vadd.f32 %v1231, %v1244
    %1246 = vdwg.mxu0
    %1247 = vmatpush.bf16.msra.mxu0 %v776
    %1248 = vmatpush.bf16.msra.mxu0 %v772
    %1249 = vmatpush.bf16.msra.mxu0 %v768
    %1250 = vmatpush.bf16.msra.mxu0 %v764
    %1251 = vmatpush.bf16.msra.mxu0 %v760
    %1252 = vmatpush.bf16.msra.mxu0 %v756
    %1253 = vmatpush.bf16.msra.mxu0 %v752
    %1254 = vmatpush.bf16.msra.mxu0 %v748
    %1255 = vmatmul.bf16.gmra.mxu0 %v259
    %v1256 = vpop.f32.mrf.mxu0
    %v1257 = vadd.f32 %v1243, %v1256
    %v1258 = vpop.f32.mrf.mxu0
    %v1259 = vadd.f32 %v1245, %v1258
    %1260 = vdwg.mxu0
    %1261 = vmatpush.bf16.msra.mxu0 %v808
    %1262 = vmatpush.bf16.msra.mxu0 %v804
    %1263 = vmatpush.bf16.msra.mxu0 %v800
    %1264 = vmatpush.bf16.msra.mxu0 %v796
    %1265 = vmatpush.bf16.msra.mxu0 %v792
    %1266 = vmatpush.bf16.msra.mxu0 %v788
    %1267 = vmatpush.bf16.msra.mxu0 %v784
    %1268 = vmatpush.bf16.msra.mxu0 %v780
    %1269 = vmatmul.bf16.gmra.mxu0 %v265
    %v1270 = vpop.f32.mrf.mxu0
    %v1271 = vadd.f32 %v1257, %v1270
    %v1272 = vpop.f32.mrf.mxu0
    %v1273 = vadd.f32 %v1259, %v1272
    %1274 = vdwg.mxu0
    %1275 = vmatpush.bf16.msra.mxu0 %v713
    %1276 = vmatpush.bf16.msra.mxu0 %v709
    %1277 = vmatpush.bf16.msra.mxu0 %v705
    %1278 = vmatpush.bf16.msra.mxu0 %v701
    %1279 = vmatpush.bf16.msra.mxu0 %v697
    %1280 = vmatpush.bf16.msra.mxu0 %v693
    %1281 = vmatpush.bf16.msra.mxu0 %v689
    %1282 = vmatpush.bf16.msra.mxu0 %v685
    %1283 = vmatmul.bf16.gmra.mxu0 %v247
    %v1284 = vpop.f32.mrf.mxu0
    %v1285 = vadd.f32 %v1103, %v1284
    %v1286 = vpop.f32.mrf.mxu0
    %v1287 = vadd.f32 %v1105, %v1286
    %1288 = vdwg.mxu0
    %1289 = vmatpush.bf16.msra.mxu0 %v745
    %1290 = vmatpush.bf16.msra.mxu0 %v741
    %1291 = vmatpush.bf16.msra.mxu0 %v737
    %1292 = vmatpush.bf16.msra.mxu0 %v733
    %1293 = vmatpush.bf16.msra.mxu0 %v729
    %1294 = vmatpush.bf16.msra.mxu0 %v725
    %1295 = vmatpush.bf16.msra.mxu0 %v721
    %1296 = vmatpush.bf16.msra.mxu0 %v717
    %1297 = vmatmul.bf16.gmra.mxu0 %v253
    %v1298 = vpop.f32.mrf.mxu0
    %v1299 = vadd.f32 %v1285, %v1298
    %v1300 = vpop.f32.mrf.mxu0
    %v1301 = vadd.f32 %v1287, %v1300
    %1302 = vdwg.mxu0
    %1303 = vmatpush.bf16.msra.mxu0 %v777
    %1304 = vmatpush.bf16.msra.mxu0 %v773
    %1305 = vmatpush.bf16.msra.mxu0 %v769
    %1306 = vmatpush.bf16.msra.mxu0 %v765
    %1307 = vmatpush.bf16.msra.mxu0 %v761
    %1308 = vmatpush.bf16.msra.mxu0 %v757
    %1309 = vmatpush.bf16.msra.mxu0 %v753
    %1310 = vmatpush.bf16.msra.mxu0 %v749
    %1311 = vmatmul.bf16.gmra.mxu0 %v259
    %v1312 = vpop.f32.mrf.mxu0
    %v1313 = vadd.f32 %v1299, %v1312
    %v1314 = vpop.f32.mrf.mxu0
    %v1315 = vadd.f32 %v1301, %v1314
    %1316 = vdwg.mxu0
    %1317 = vmatpush.bf16.msra.mxu0 %v809
    %1318 = vmatpush.bf16.msra.mxu0 %v805
    %1319 = vmatpush.bf16.msra.mxu0 %v801
    %1320 = vmatpush.bf16.msra.mxu0 %v797
    %1321 = vmatpush.bf16.msra.mxu0 %v793
    %1322 = vmatpush.bf16.msra.mxu0 %v789
    %1323 = vmatpush.bf16.msra.mxu0 %v785
    %1324 = vmatpush.bf16.msra.mxu0 %v781
    %1325 = vmatmul.bf16.gmra.mxu0 %v265
    %v1326 = vpop.f32.mrf.mxu0
    %v1327 = vadd.f32 %v1313, %v1326
    %v1328 = vpop.f32.mrf.mxu0
    %v1329 = vadd.f32 %v1315, %v1328
    %1330 = vdwg.mxu0
    %1331 = vmatpush.bf16.msra.mxu0 %v714
    %1332 = vmatpush.bf16.msra.mxu0 %v710
    %1333 = vmatpush.bf16.msra.mxu0 %v706
    %1334 = vmatpush.bf16.msra.mxu0 %v702
    %1335 = vmatpush.bf16.msra.mxu0 %v698
    %1336 = vmatpush.bf16.msra.mxu0 %v694
    %1337 = vmatpush.bf16.msra.mxu0 %v690
    %1338 = vmatpush.bf16.msra.mxu0 %v686
    %1339 = vmatmul.bf16.gmra.mxu0 %v247
    %v1340 = vpop.f32.mrf.mxu0
    %v1341 = vadd.f32 %v1159, %v1340
    %v1342 = vpop.f32.mrf.mxu0
    %v1343 = vadd.f32 %v1161, %v1342
    %1344 = vdwg.mxu0
    %1345 = vmatpush.bf16.msra.mxu0 %v746
    %1346 = vmatpush.bf16.msra.mxu0 %v742
    %1347 = vmatpush.bf16.msra.mxu0 %v738
    %1348 = vmatpush.bf16.msra.mxu0 %v734
    %1349 = vmatpush.bf16.msra.mxu0 %v730
    %1350 = vmatpush.bf16.msra.mxu0 %v726
    %1351 = vmatpush.bf16.msra.mxu0 %v722
    %1352 = vmatpush.bf16.msra.mxu0 %v718
    %1353 = vmatmul.bf16.gmra.mxu0 %v253
    %v1354 = vpop.f32.mrf.mxu0
    %v1355 = vadd.f32 %v1341, %v1354
    %v1356 = vpop.f32.mrf.mxu0
    %v1357 = vadd.f32 %v1343, %v1356
    %1358 = vdwg.mxu0
    %1359 = vmatpush.bf16.msra.mxu0 %v778
    %1360 = vmatpush.bf16.msra.mxu0 %v774
    %1361 = vmatpush.bf16.msra.mxu0 %v770
    %1362 = vmatpush.bf16.msra.mxu0 %v766
    %1363 = vmatpush.bf16.msra.mxu0 %v762
    %1364 = vmatpush.bf16.msra.mxu0 %v758
    %1365 = vmatpush.bf16.msra.mxu0 %v754
    %1366 = vmatpush.bf16.msra.mxu0 %v750
    %1367 = vmatmul.bf16.gmra.mxu0 %v259
    %v1368 = vpop.f32.mrf.mxu0
    %v1369 = vadd.f32 %v1355, %v1368
    %v1370 = vpop.f32.mrf.mxu0
    %v1371 = vadd.f32 %v1357, %v1370
    %1372 = vdwg.mxu0
    %1373 = vmatpush.bf16.msra.mxu0 %v810
    %1374 = vmatpush.bf16.msra.mxu0 %v806
    %1375 = vmatpush.bf16.msra.mxu0 %v802
    %1376 = vmatpush.bf16.msra.mxu0 %v798
    %1377 = vmatpush.bf16.msra.mxu0 %v794
    %1378 = vmatpush.bf16.msra.mxu0 %v790
    %1379 = vmatpush.bf16.msra.mxu0 %v786
    %1380 = vmatpush.bf16.msra.mxu0 %v782
    %1381 = vmatmul.bf16.gmra.mxu0 %v265
    %v1382 = vpop.f32.mrf.mxu0
    %v1383 = vadd.f32 %v1369, %v1382
    %v1384 = vpop.f32.mrf.mxu0
    %v1385 = vadd.f32 %v1371, %v1384
    %1386 = vdwg.mxu0
    %v1387 = vsel %vm227, %v97, 0
    %v1388 = vsel %vm228, %v98, 0
    %v1389 = vsel %vm231, %v97, 0
    %v1390 = vsel %vm232, %v98, 0
    %v1391 = vsel %vm235, %v97, 0
    %v1392 = vsel %vm236, %v98, 0
    %v1393 = vsel %vm239, %v97, 0
    %v1394 = vsel %vm240, %v98, 0
    %v1397 = vunpack.c.l.b16 %v1387
    %v1398 = vunpack.c.l.b16 %v1388
    %v1399 = vpack.c.b16 %v1398, %v1397
    %v1403 = vunpack.c.l.b16 %v1389
    %v1404 = vunpack.c.l.b16 %v1390
    %v1405 = vpack.c.b16 %v1404, %v1403
    %v1409 = vunpack.c.l.b16 %v1391
    %v1410 = vunpack.c.l.b16 %v1392
    %v1411 = vpack.c.b16 %v1410, %v1409
    %v1415 = vunpack.c.l.b16 %v1393
    %v1416 = vunpack.c.l.b16 %v1394
    %v1417 = vpack.c.b16 %v1416, %v1415
    %1419 = vmatpush.bf16.msra.mxu0 %v711
    %1420 = vmatpush.bf16.msra.mxu0 %v707
    %1421 = vmatpush.bf16.msra.mxu0 %v703
    %1422 = vmatpush.bf16.msra.mxu0 %v699
    %1423 = vmatpush.bf16.msra.mxu0 %v695
    %1424 = vmatpush.bf16.msra.mxu0 %v691
    %1425 = vmatpush.bf16.msra.mxu0 %v687
    %1426 = vmatpush.bf16.msra.mxu0 %v683
    %1427 = vmatmul.bf16.gmra.mxu0 %v1399
    %v1428 = vpop.f32.mrf.mxu0
    %v1429 = vadd.f32 0.0, %v1428
    %v1430 = vpop.f32.mrf.mxu0
    %v1431 = vadd.f32 0.0, %v1430
    %1432 = vdwg.mxu0
    %1433 = vmatpush.bf16.msra.mxu0 %v743
    %1434 = vmatpush.bf16.msra.mxu0 %v739
    %1435 = vmatpush.bf16.msra.mxu0 %v735
    %1436 = vmatpush.bf16.msra.mxu0 %v731
    %1437 = vmatpush.bf16.msra.mxu0 %v727
    %1438 = vmatpush.bf16.msra.mxu0 %v723
    %1439 = vmatpush.bf16.msra.mxu0 %v719
    %1440 = vmatpush.bf16.msra.mxu0 %v715
    %1441 = vmatmul.bf16.gmra.mxu0 %v1405
    %v1442 = vpop.f32.mrf.mxu0
    %v1443 = vadd.f32 %v1429, %v1442
    %v1444 = vpop.f32.mrf.mxu0
    %v1445 = vadd.f32 %v1431, %v1444
    %1446 = vdwg.mxu0
    %1447 = vmatpush.bf16.msra.mxu0 %v775
    %1448 = vmatpush.bf16.msra.mxu0 %v771
    %1449 = vmatpush.bf16.msra.mxu0 %v767
    %1450 = vmatpush.bf16.msra.mxu0 %v763
    %1451 = vmatpush.bf16.msra.mxu0 %v759
    %1452 = vmatpush.bf16.msra.mxu0 %v755
    %1453 = vmatpush.bf16.msra.mxu0 %v751
    %1454 = vmatpush.bf16.msra.mxu0 %v747
    %1455 = vmatmul.bf16.gmra.mxu0 %v1411
    %v1456 = vpop.f32.mrf.mxu0
    %v1457 = vadd.f32 %v1443, %v1456
    %v1458 = vpop.f32.mrf.mxu0
    %v1459 = vadd.f32 %v1445, %v1458
    %1460 = vdwg.mxu0
    %1461 = vmatpush.bf16.msra.mxu0 %v807
    %1462 = vmatpush.bf16.msra.mxu0 %v803
    %1463 = vmatpush.bf16.msra.mxu0 %v799
    %1464 = vmatpush.bf16.msra.mxu0 %v795
    %1465 = vmatpush.bf16.msra.mxu0 %v791
    %1466 = vmatpush.bf16.msra.mxu0 %v787
    %1467 = vmatpush.bf16.msra.mxu0 %v783
    %1468 = vmatpush.bf16.msra.mxu0 %v779
    %1469 = vmatmul.bf16.gmra.mxu0 %v1417
    %v1470 = vpop.f32.mrf.mxu0
    %v1471 = vadd.f32 %v1457, %v1470
    %v1472 = vpop.f32.mrf.mxu0
    %v1473 = vadd.f32 %v1459, %v1472
    %1474 = vdwg.mxu0
    %1475 = vmatpush.bf16.msra.mxu0 %v712
    %1476 = vmatpush.bf16.msra.mxu0 %v708
    %1477 = vmatpush.bf16.msra.mxu0 %v704
    %1478 = vmatpush.bf16.msra.mxu0 %v700
    %1479 = vmatpush.bf16.msra.mxu0 %v696
    %1480 = vmatpush.bf16.msra.mxu0 %v692
    %1481 = vmatpush.bf16.msra.mxu0 %v688
    %1482 = vmatpush.bf16.msra.mxu0 %v684
    %1483 = vmatmul.bf16.gmra.mxu0 %v1399
    %v1484 = vpop.f32.mrf.mxu0
    %v1485 = vadd.f32 0.0, %v1484
    %v1486 = vpop.f32.mrf.mxu0
    %v1487 = vadd.f32 0.0, %v1486
    %1488 = vdwg.mxu0
    %1489 = vmatpush.bf16.msra.mxu0 %v744
    %1490 = vmatpush.bf16.msra.mxu0 %v740
    %1491 = vmatpush.bf16.msra.mxu0 %v736
    %1492 = vmatpush.bf16.msra.mxu0 %v732
    %1493 = vmatpush.bf16.msra.mxu0 %v728
    %1494 = vmatpush.bf16.msra.mxu0 %v724
    %1495 = vmatpush.bf16.msra.mxu0 %v720
    %1496 = vmatpush.bf16.msra.mxu0 %v716
    %1497 = vmatmul.bf16.gmra.mxu0 %v1405
    %v1498 = vpop.f32.mrf.mxu0
    %v1499 = vadd.f32 %v1485, %v1498
    %v1500 = vpop.f32.mrf.mxu0
    %v1501 = vadd.f32 %v1487, %v1500
    %1502 = vdwg.mxu0
    %1503 = vmatpush.bf16.msra.mxu0 %v776
    %1504 = vmatpush.bf16.msra.mxu0 %v772
    %1505 = vmatpush.bf16.msra.mxu0 %v768
    %1506 = vmatpush.bf16.msra.mxu0 %v764
    %1507 = vmatpush.bf16.msra.mxu0 %v760
    %1508 = vmatpush.bf16.msra.mxu0 %v756
    %1509 = vmatpush.bf16.msra.mxu0 %v752
    %1510 = vmatpush.bf16.msra.mxu0 %v748
    %1511 = vmatmul.bf16.gmra.mxu0 %v1411
    %v1512 = vpop.f32.mrf.mxu0
    %v1513 = vadd.f32 %v1499, %v1512
    %v1514 = vpop.f32.mrf.mxu0
    %v1515 = vadd.f32 %v1501, %v1514
    %1516 = vdwg.mxu0
    %1517 = vmatpush.bf16.msra.mxu0 %v808
    %1518 = vmatpush.bf16.msra.mxu0 %v804
    %1519 = vmatpush.bf16.msra.mxu0 %v800
    %1520 = vmatpush.bf16.msra.mxu0 %v796
    %1521 = vmatpush.bf16.msra.mxu0 %v792
    %1522 = vmatpush.bf16.msra.mxu0 %v788
    %1523 = vmatpush.bf16.msra.mxu0 %v784
    %1524 = vmatpush.bf16.msra.mxu0 %v780
    %1525 = vmatmul.bf16.gmra.mxu0 %v1417
    %v1526 = vpop.f32.mrf.mxu0
    %v1527 = vadd.f32 %v1513, %v1526
    %v1528 = vpop.f32.mrf.mxu0
    %v1529 = vadd.f32 %v1515, %v1528
    %1530 = vdwg.mxu0
    %1531 = vmatpush.bf16.msra.mxu0 %v713
    %1532 = vmatpush.bf16.msra.mxu0 %v709
    %1533 = vmatpush.bf16.msra.mxu0 %v705
    %1534 = vmatpush.bf16.msra.mxu0 %v701
    %1535 = vmatpush.bf16.msra.mxu0 %v697
    %1536 = vmatpush.bf16.msra.mxu0 %v693
    %1537 = vmatpush.bf16.msra.mxu0 %v689
    %1538 = vmatpush.bf16.msra.mxu0 %v685
    %1539 = vmatmul.bf16.gmra.mxu0 %v1399
    %v1540 = vpop.f32.mrf.mxu0
    %v1541 = vadd.f32 0.0, %v1540
    %v1542 = vpop.f32.mrf.mxu0
    %v1543 = vadd.f32 0.0, %v1542
    %1544 = vdwg.mxu0
    %1545 = vmatpush.bf16.msra.mxu0 %v745
    %1546 = vmatpush.bf16.msra.mxu0 %v741
    %1547 = vmatpush.bf16.msra.mxu0 %v737
    %1548 = vmatpush.bf16.msra.mxu0 %v733
    %1549 = vmatpush.bf16.msra.mxu0 %v729
    %1550 = vmatpush.bf16.msra.mxu0 %v725
    %1551 = vmatpush.bf16.msra.mxu0 %v721
    %1552 = vmatpush.bf16.msra.mxu0 %v717
    %1553 = vmatmul.bf16.gmra.mxu0 %v1405
    %v1554 = vpop.f32.mrf.mxu0
    %v1555 = vadd.f32 %v1541, %v1554
    %v1556 = vpop.f32.mrf.mxu0
    %v1557 = vadd.f32 %v1543, %v1556
    %1558 = vdwg.mxu0
    %1559 = vmatpush.bf16.msra.mxu0 %v777
    %1560 = vmatpush.bf16.msra.mxu0 %v773
    %1561 = vmatpush.bf16.msra.mxu0 %v769
    %1562 = vmatpush.bf16.msra.mxu0 %v765
    %1563 = vmatpush.bf16.msra.mxu0 %v761
    %1564 = vmatpush.bf16.msra.mxu0 %v757
    %1565 = vmatpush.bf16.msra.mxu0 %v753
    %1566 = vmatpush.bf16.msra.mxu0 %v749
    %1567 = vmatmul.bf16.gmra.mxu0 %v1411
    %v1568 = vpop.f32.mrf.mxu0
    %v1569 = vadd.f32 %v1555, %v1568
    %v1570 = vpop.f32.mrf.mxu0
    %v1571 = vadd.f32 %v1557, %v1570
    %1572 = vdwg.mxu0
    %1573 = vmatpush.bf16.msra.mxu0 %v809
    %1574 = vmatpush.bf16.msra.mxu0 %v805
    %1575 = vmatpush.bf16.msra.mxu0 %v801
    %1576 = vmatpush.bf16.msra.mxu0 %v797
    %1577 = vmatpush.bf16.msra.mxu0 %v793
    %1578 = vmatpush.bf16.msra.mxu0 %v789
    %1579 = vmatpush.bf16.msra.mxu0 %v785
    %1580 = vmatpush.bf16.msra.mxu0 %v781
    %1581 = vmatmul.bf16.gmra.mxu0 %v1417
    %v1582 = vpop.f32.mrf.mxu0
    %v1583 = vadd.f32 %v1569, %v1582
    %v1584 = vpop.f32.mrf.mxu0
    %v1585 = vadd.f32 %v1571, %v1584
    %1586 = vdwg.mxu0
    %1587 = vmatpush.bf16.msra.mxu0 %v714
    %1588 = vmatpush.bf16.msra.mxu0 %v710
    %1589 = vmatpush.bf16.msra.mxu0 %v706
    %1590 = vmatpush.bf16.msra.mxu0 %v702
    %1591 = vmatpush.bf16.msra.mxu0 %v698
    %1592 = vmatpush.bf16.msra.mxu0 %v694
    %1593 = vmatpush.bf16.msra.mxu0 %v690
    %1594 = vmatpush.bf16.msra.mxu0 %v686
    %1595 = vmatmul.bf16.gmra.mxu0 %v1399
    %v1596 = vpop.f32.mrf.mxu0
    %v1597 = vadd.f32 0.0, %v1596
    %v1598 = vpop.f32.mrf.mxu0
    %v1599 = vadd.f32 0.0, %v1598
    %1600 = vdwg.mxu0
    %1601 = vmatpush.bf16.msra.mxu0 %v746
    %1602 = vmatpush.bf16.msra.mxu0 %v742
    %1603 = vmatpush.bf16.msra.mxu0 %v738
    %1604 = vmatpush.bf16.msra.mxu0 %v734
    %1605 = vmatpush.bf16.msra.mxu0 %v730
    %1606 = vmatpush.bf16.msra.mxu0 %v726
    %1607 = vmatpush.bf16.msra.mxu0 %v722
    %1608 = vmatpush.bf16.msra.mxu0 %v718
    %1609 = vmatmul.bf16.gmra.mxu0 %v1405
    %v1610 = vpop.f32.mrf.mxu0
    %v1611 = vadd.f32 %v1597, %v1610
    %v1612 = vpop.f32.mrf.mxu0
    %v1613 = vadd.f32 %v1599, %v1612
    %1614 = vdwg.mxu0
    %1615 = vmatpush.bf16.msra.mxu0 %v778
    %1616 = vmatpush.bf16.msra.mxu0 %v774
    %1617 = vmatpush.bf16.msra.mxu0 %v770
    %1618 = vmatpush.bf16.msra.mxu0 %v766
    %1619 = vmatpush.bf16.msra.mxu0 %v762
    %1620 = vmatpush.bf16.msra.mxu0 %v758
    %1621 = vmatpush.bf16.msra.mxu0 %v754
    %1622 = vmatpush.bf16.msra.mxu0 %v750
    %1623 = vmatmul.bf16.gmra.mxu0 %v1411
    %v1624 = vpop.f32.mrf.mxu0
    %v1625 = vadd.f32 %v1611, %v1624
    %v1626 = vpop.f32.mrf.mxu0
    %v1627 = vadd.f32 %v1613, %v1626
    %1628 = vdwg.mxu0
    %1629 = vmatpush.bf16.msra.mxu0 %v810
    %1630 = vmatpush.bf16.msra.mxu0 %v806
    %1631 = vmatpush.bf16.msra.mxu0 %v802
    %1632 = vmatpush.bf16.msra.mxu0 %v798
    %1633 = vmatpush.bf16.msra.mxu0 %v794
    %1634 = vmatpush.bf16.msra.mxu0 %v790
    %1635 = vmatpush.bf16.msra.mxu0 %v786
    %1636 = vmatpush.bf16.msra.mxu0 %v782
    %1637 = vmatmul.bf16.gmra.mxu0 %v1417
    %v1638 = vpop.f32.mrf.mxu0
    %v1639 = vadd.f32 %v1625, %v1638
    %v1640 = vpop.f32.mrf.mxu0
    %v1641 = vadd.f32 %v1627, %v1640
    %1642 = vdwg.mxu0
    %v1643 = vadd.f32 %v1215, %v1471
    %v1644 = vadd.f32 %v1271, %v1527
    %v1645 = vadd.f32 %v1327, %v1583
    %v1646 = vadd.f32 %v1383, %v1639
    %v1647 = vadd.f32 %v1217, %v1473
    %v1648 = vadd.f32 %v1273, %v1529
    %v1649 = vadd.f32 %v1329, %v1585
    %v1650 = vadd.f32 %v1385, %v1641
    %1651 = vst [vmem:[#allocation8] sm:$0xff] %v1643
    %1652 = vst [vmem:[#allocation8 + $0x8] sm:$0xff] %v1644
    %1653 = vst [vmem:[#allocation8 + $0x10] sm:$0xff] %v1645
    %1654 = vst [vmem:[#allocation8 + $0x18] sm:$0xff] %v1646
    %1655 = vst [vmem:[#allocation8 + $0x20] sm:$0xff] %v1647
    %1656 = vst [vmem:[#allocation8 + $0x28] sm:$0xff] %v1648
    %1657 = vst [vmem:[#allocation8 + $0x30] sm:$0xff] %v1649
    %1658 = vst [vmem:[#allocation8 + $0x38] sm:$0xff] %v1650
    // Predicated region
    $region26: #{tpu_custom_call.1} parent=1 // pred_check
      _
    $region27: #{tpu_custom_call.1} parent=1 // pred_check_branch
      %1660 = sbr.rel (0) target = $region29
    $region28: #{tpu_custom_call.1} parent=1 // pred_region
      %1662 = vsyncadd [#allocation4], 0
      %s1663 = sshll.u32 [#allocation8], 4
      %s1664 = int_to_ptr.vmem [resolvable:$true] %s1663
      %s1665 = sshll.u32 %s3, 4
      %s1666 = int_to_ptr.hbm [resolvable:$true] %s1665
      %1671 = dma.vmem_to_hbm [thread:$0]  %s1664, 1024, %s1666, [#allocation4], 512, 512, 32
    $region29: #{tpu_custom_call.1} parent=1 // pred_fallthru
      _
    // Predicated region
    $region30: #{tpu_custom_call.1} parent=1 // pred_check
      _
    $region31: #{tpu_custom_call.1} parent=1 // pred_check_branch
      %1673 = sbr.rel (0) target = $region33
    $region32: #{tpu_custom_call.1} parent=1 // pred_region
      %1675 = dma.done [#allocation4], 1024
    $region33: #{tpu_custom_call.1} parent=1 // pred_fallthru
      _
    %1676 = vsyncpa [#allocation3], 1
    %1677 = vsyncpa [#allocation6], 1
    %1678 = vsyncpa [#allocation4], 1

</llo_original>
